<compile_context>
chip_gen: v6e
topology: v6e:2x2x1
jax: 0.10.0
libtpu: 0.0.40
codegen_flags: <defaults>
</compile_context>

<pallas_src>
import functools
import math

import jax
import jax.numpy as jnp
from jax.experimental import pallas as pl
from jax.experimental.pallas import tpu as pltpu


def _residual_kernel(x_ref, p_ref, o_ref, xs_ref, *, k, pad, approx_gelu):
    # x_ref / o_ref: (1, H, W, TC)   channels-last tile, C on the lane axis
    # p_ref:         (k*k + 3, TC)   rows 0..k*k-1 = taps, then bias, scale, shift
    # xs_ref:        (H+2p, Wp_pad, TC) fp32 scratch; only cols [0, W+2p) are used
    _, H, W, TC = x_ref.shape
    Hp = H + 2 * pad          # rows actually used
    Wr = W + 2 * pad          # columns actually read (scratch may be wider: sublane pad)

    x = x_ref[0]              # (H, W, TC), input dtype

    # Re-zero only the halo that the taps actually read (scratch persists
    # across grid steps and megacore sharding, so we cannot rely on a
    # one-time init).  Corners are covered by the full-width row writes, so
    # the column writes only span the interior rows.
    if pad > 0:
        zrow = jnp.zeros((pad, Wr, TC), jnp.float32)
        zcol = jnp.zeros((H, pad, TC), jnp.float32)
        xs_ref[0:pad, 0:Wr, :] = zrow
        xs_ref[Hp - pad:Hp, 0:Wr, :] = zrow
        xs_ref[pad:pad + H, 0:pad, :] = zcol
        xs_ref[pad:pad + H, W + pad:Wr, :] = zcol
    xs_ref[pad:pad + H, pad:pad + W, :] = x.astype(jnp.float32)

    def prow(i):
        # per-channel lane vector (fp32), broadcast over (H, W)
        return p_ref[i, :][None, None, :]

    # Depthwise conv, unrolled over the k*k taps (VPU work).
    acc = xs_ref[0:H, 0:W, :] * prow(0)
    for di in range(k):
        for dj in range(k):
            if di == 0 and dj == 0:
                continue
            acc = acc + xs_ref[di:di + H, dj:dj + W, :] * prow(di * k + dj)
    acc = acc + prow(k * k)                      # conv bias

    # GELU: tanh approximation by default -> transcendental on the EUP
    # (idle bundle slot); exact erf (VALU polynomial) behind the flag for
    # bit-parity with nn.GELU().
    g = jax.nn.gelu(acc, approximate=approx_gelu)

    # Folded BatchNorm2d (inference) affine + residual add, all fp32.
    y = g * prow(k * k + 1) + prow(k * k + 2) + x.astype(jnp.float32)
    o_ref[0] = y.astype(o_ref.dtype)


def _round_up(v, m):
    return (v + m - 1) // m * m


def _vmem_block_bytes(H, W, tile_c, k, pad, x_dtype):
    """Estimated VMEM footprint of one grid step (incl. double buffering)."""
    itemsize = jnp.dtype(x_dtype).itemsize
    xb = H * W * tile_c * itemsize                       # one x input block
    ob = xb                                              # one output block
    wp_pad = _round_up(W + 2 * pad, 8)
    scratch = (H + 2 * pad) * wp_pad * tile_c * 4        # fp32 padded scratch
    params = (k * k + 3) * tile_c * 4
    return 2 * xb + 2 * ob + 2 * params + scratch        # in/out/params 2x-buffered


def _pick_channel_tile(N, H, W, C, k, pad, x_dtype, budget_bytes):
    """Largest lane-dense channel tile that fits the VMEM budget, with a
    preference for a megacore-balanced parallel grid (v7x has 2 TCs)."""
    cands = [tc for tc in (1024, 768, 640, 512, 384, 256, 128) if C % tc == 0]
    if not cands:
        cands = [C]   # small / non-128-multiple C: lane-masked but correct

    def bytes_of(tc):
        return _vmem_block_bytes(H, W, tc, k, pad, x_dtype)

    feasible = [tc for tc in cands if bytes_of(tc) <= budget_bytes]
    if not feasible:
        feasible = [min(cands, key=bytes_of)]

    def steps(tc):
        return N * (C // tc)

    # Prefer the largest feasible tile whose flattened parallel grid is even
    # and has >= 4 steps (both v7x cores busy and balanced); then >= 2 steps.
    for tc in feasible:
        if steps(tc) >= 4 and steps(tc) % 2 == 0:
            return tc
    for tc in feasible:
        if steps(tc) >= 2:
            return tc
    return feasible[0]


def residual_convmixer_block_nhwc(x, w, b, gamma, beta, running_mean,
                                  running_var, *, kernel_size=3, eps=1e-5,
                                  approx_gelu=True,
                                  vmem_budget_bytes=12 * 1024 * 1024):
    """BN(GELU(depthwise_conv(x))) + x for channels-last x of shape (N,H,W,C).

    w: depthwise weights (C, k, k); b: conv bias (C,); BN params are (C,).
    approx_gelu=True (default) uses tanh GELU on the EUP; set False for
    bit-exact parity with PyTorch nn.GELU() (exact erf, more VALU work).
    """
    N, H, W, C = x.shape
    k = kernel_size
    assert k % 2 == 1, "padding='same' handled here only for odd kernel_size"
    pad = k // 2

    # Fold BatchNorm into a per-channel affine and pack all per-channel params
    # lane-dense: rows = [k*k taps, bias, scale, shift], lanes = C.
    scale = gamma / jnp.sqrt(running_var + eps)
    shift = beta - running_mean * scale
    w_rows = jnp.transpose(w.reshape(C, k * k), (1, 0))          # (k*k, C)
    params = jnp.concatenate(
        [w_rows, b[None, :], scale[None, :], shift[None, :]], axis=0
    ).astype(jnp.float32)                                        # (k*k+3, C)

    TC = _pick_channel_tile(N, H, W, C, k, pad, x.dtype, vmem_budget_bytes)
    Hp = H + 2 * pad
    Wp_pad = _round_up(W + 2 * pad, 8)    # sublane-aligned scratch rows

    needed = _vmem_block_bytes(H, W, TC, k, pad, x.dtype)
    vmem_limit = int(min(max(2 * needed, 16 * 1024 * 1024), 64 * 1024 * 1024))

    kernel = functools.partial(_residual_kernel, k=k, pad=pad,
                               approx_gelu=approx_gelu)

    return pl.pallas_call(
        kernel,
        out_shape=jax.ShapeDtypeStruct((N, H, W, C), x.dtype),
        grid_spec=pltpu.PrefetchScalarGridSpec(
            num_scalar_prefetch=0,
            grid=(N, C // TC),
            in_specs=[
                pl.BlockSpec((1, H, W, TC), lambda n, c: (n, 0, 0, c)),
                pl.BlockSpec((k * k + 3, TC), lambda n, c: (0, c)),
            ],
            out_specs=pl.BlockSpec((1, H, W, TC), lambda n, c: (n, 0, 0, c)),
            scratch_shapes=[pltpu.VMEM((Hp, Wp_pad, TC), jnp.float32)],
        ),
        compiler_params=pltpu.CompilerParams(
            dimension_semantics=("parallel", "parallel"),
            vmem_limit_bytes=vmem_limit),
    )(x, params)


def residual_convmixer_block(x, w, b, gamma, beta, running_mean, running_var,
                             *, kernel_size=3, eps=1e-5, approx_gelu=True):
    """NCHW entry point matching the PyTorch module interface.

    Transposes to channels-last at the boundary.  For production, keep
    activations NHWC end-to-end and call residual_convmixer_block_nhwc
    directly: each transpose here is a full HBM read+write of the tensor.
    """
    x_nhwc = jnp.transpose(x, (0, 2, 3, 1))
    out = residual_convmixer_block_nhwc(
        x_nhwc, w, b, gamma, beta, running_mean, running_var,
        kernel_size=kernel_size, eps=eps, approx_gelu=approx_gelu)
    return jnp.transpose(out, (0, 3, 1, 2))


def _reference(x, w, b, gamma, beta, running_mean, running_var,
               *, kernel_size=3, eps=1e-5, approx_gelu=True):
    """Pure-JAX NCHW reference of the same computation."""
    N, C, H, W = x.shape
    k = kernel_size
    pad = k // 2
    xp = jnp.pad(x, ((0, 0), (0, 0), (pad, pad), (pad, pad)))
    acc = jnp.zeros((N, C, H, W), jnp.float32)
    for di in range(k):
        for dj in range(k):
            acc = acc + xp[:, :, di:di + H, dj:dj + W] * w[None, :, di, dj, None, None]
    acc = acc + b[None, :, None, None]
    g = jax.nn.gelu(acc, approximate=approx_gelu)
    scale = gamma / jnp.sqrt(running_var + eps)
    shift = beta - running_mean * scale
    y = g * scale[None, :, None, None] + shift[None, :, None, None]
    return y + x


if __name__ == "__main__":
    key = jax.random.PRNGKey(0)
    k_x, k_w, k_b, k_g, k_bt, k_m, k_v = jax.random.split(key, 7)

    N, C, H, W = 2, 4, 16, 16
    kernel_size = 3

    x = jax.random.normal(k_x, (N, C, H, W), dtype=jnp.float32)
    # depthwise conv weight: PyTorch shape (C, 1, k, k) -> stored as (C, k, k)
    fan_in = kernel_size * kernel_size
    bound = 1.0 / math.sqrt(fan_in)
    w = jax.random.uniform(k_w, (C, kernel_size, kernel_size),
                           minval=-bound, maxval=bound, dtype=jnp.float32)
    b = jax.random.uniform(k_b, (C,), minval=-bound, maxval=bound,
                           dtype=jnp.float32)
    gamma = 1.0 + 0.1 * jax.random.normal(k_g, (C,), dtype=jnp.float32)
    beta = 0.1 * jax.random.normal(k_bt, (C,), dtype=jnp.float32)
    running_mean = 0.1 * jax.random.normal(k_m, (C,), dtype=jnp.float32)
    running_var = jnp.abs(1.0 + 0.1 * jax.random.normal(k_v, (C,),
                                                        dtype=jnp.float32))

    # Default path: tanh-approx GELU (EUP); compare against matching reference
    # tightly, and against exact-erf nn.GELU() numerics loosely.
    out = residual_convmixer_block(x, w, b, gamma, beta,
                                   running_mean, running_var,
                                   kernel_size=kernel_size)
    out = jax.block_until_ready(out)
    assert out.shape == (N, C, H, W)

    ref_tanh = _reference(x, w, b, gamma, beta, running_mean, running_var,
                          kernel_size=kernel_size, approx_gelu=True)
    ref_erf = _reference(x, w, b, gamma, beta, running_mean, running_var,
                         kernel_size=kernel_size, approx_gelu=False)
    assert jnp.allclose(out, ref_tanh, atol=1e-5, rtol=1e-5)
    assert jnp.allclose(out, ref_erf, atol=1e-2, rtol=1e-2)

    # Exact-erf path (bit-parity with PyTorch nn.GELU()) also exercised.
    out_exact = residual_convmixer_block(x, w, b, gamma, beta,
                                         running_mean, running_var,
                                         kernel_size=kernel_size,
                                         approx_gelu=False)
    out_exact = jax.block_until_ready(out_exact)
    assert jnp.allclose(out_exact, ref_erf, atol=1e-5, rtol=1e-5)

    print("KERNEL_OK")
</pallas_src>

<mosaic_0001>
module attributes {stable_mosaic.version = 11 : i64} {
  func.func @_residual_kernel(%arg0: i32, %arg1: i32, %arg2: memref<1x16x16x4xf32, #tpu.memory_space<vmem>>, %arg3: memref<12x4xf32, #tpu.memory_space<vmem>>, %arg4: memref<1x16x16x4xf32, #tpu.memory_space<vmem>>, %arg5: memref<18x24x4xf32, #tpu.memory_space<vmem>>) attributes {dimension_semantics = [#tpu.dimension_semantics<parallel>, #tpu.dimension_semantics<parallel>], iteration_bounds = array<i64: 2, 1>, scalar_prefetch = 0 : i64, scratch_operands = 1 : i64, tpu.core_type = #tpu.core_type<tc>, window_params = [{transform_indices = @transform_0, window_bounds = array<i64: 1, 16, 16, 4>}, {transform_indices = @transform_1, window_bounds = array<i64: 12, 4>}, {transform_indices = @transform_2, window_bounds = array<i64: 1, 16, 16, 4>}]} {
    %c0 = arith.constant 0 : index
    %c0_0 = arith.constant 0 : index
    %c0_1 = arith.constant 0 : index
    %c0_2 = arith.constant 0 : index
    %0 = vector.load %arg2[%c0, %c0_0, %c0_1, %c0_2] : memref<1x16x16x4xf32, #tpu.memory_space<vmem>>, vector<1x16x16x4xf32>
    %1 = vector.shape_cast %0 : vector<1x16x16x4xf32> to vector<16x16x4xf32>
    %cst = arith.constant 0.000000e+00 : f32
    %2 = vector.broadcast %cst : f32 to vector<1x18x4xf32>
    %cst_3 = arith.constant 0.000000e+00 : f32
    %3 = vector.broadcast %cst_3 : f32 to vector<16x1x4xf32>
    %c0_4 = arith.constant 0 : index
    %c0_5 = arith.constant 0 : index
    %c0_6 = arith.constant 0 : index
    %4 = vector.load %arg5[%c0_4, %c0_5, %c0_6] : memref<18x24x4xf32, #tpu.memory_space<vmem>>, vector<1x18x4xf32>
    tpu.vector_store %arg5[%c0_4, %c0_5, %c0_6], %2 {strides = array<i32>} : memref<18x24x4xf32, #tpu.memory_space<vmem>>, vector<1x18x4xf32>,
    %c17 = arith.constant 17 : index
    %c0_7 = arith.constant 0 : index
    %c0_8 = arith.constant 0 : index
    %5 = vector.load %arg5[%c17, %c0_7, %c0_8] : memref<18x24x4xf32, #tpu.memory_space<vmem>>, vector<1x18x4xf32>
    tpu.vector_store %arg5[%c17, %c0_7, %c0_8], %2 {strides = array<i32>} : memref<18x24x4xf32, #tpu.memory_space<vmem>>, vector<1x18x4xf32>,
    %c1 = arith.constant 1 : index
    %c0_9 = arith.constant 0 : index
    %c0_10 = arith.constant 0 : index
    %6 = vector.load %arg5[%c1, %c0_9, %c0_10] : memref<18x24x4xf32, #tpu.memory_space<vmem>>, vector<16x1x4xf32>
    tpu.vector_store %arg5[%c1, %c0_9, %c0_10], %3 {strides = array<i32>} : memref<18x24x4xf32, #tpu.memory_space<vmem>>, vector<16x1x4xf32>,
    %c1_11 = arith.constant 1 : index
    %c17_12 = arith.constant 17 : index
    %c0_13 = arith.constant 0 : index
    %7 = vector.load %arg5[%c1_11, %c17_12, %c0_13] : memref<18x24x4xf32, #tpu.memory_space<vmem>>, vector<16x1x4xf32>
    tpu.vector_store %arg5[%c1_11, %c17_12, %c0_13], %3 {strides = array<i32>} : memref<18x24x4xf32, #tpu.memory_space<vmem>>, vector<16x1x4xf32>,
    %c1_14 = arith.constant 1 : index
    %c1_15 = arith.constant 1 : index
    %c0_16 = arith.constant 0 : index
    %8 = vector.load %arg5[%c1_14, %c1_15, %c0_16] : memref<18x24x4xf32, #tpu.memory_space<vmem>>, vector<16x16x4xf32>
    tpu.vector_store %arg5[%c1_14, %c1_15, %c0_16], %1 {strides = array<i32>} : memref<18x24x4xf32, #tpu.memory_space<vmem>>, vector<16x16x4xf32>,
    %c0_17 = arith.constant 0 : index
    %c0_18 = arith.constant 0 : index
    %c0_19 = arith.constant 0 : index
    %9 = vector.load %arg5[%c0_17, %c0_18, %c0_19] : memref<18x24x4xf32, #tpu.memory_space<vmem>>, vector<16x16x4xf32>
    %c0_20 = arith.constant 0 : index
    %c0_21 = arith.constant 0 : index
    %10 = vector.load %arg3[%c0_20, %c0_21] : memref<12x4xf32, #tpu.memory_space<vmem>>, vector<1x4xf32>
    %11 = vector.shape_cast %10 : vector<1x4xf32> to vector<4xf32>
    %12 = vector.shape_cast %11 : vector<4xf32> to vector<1x1x4xf32>
    %13 = vector.broadcast %12 : vector<1x1x4xf32> to vector<16x16x4xf32>
    %14 = arith.mulf %9, %13 : vector<16x16x4xf32>
    %c0_22 = arith.constant 0 : index
    %c1_23 = arith.constant 1 : index
    %c0_24 = arith.constant 0 : index
    %15 = vector.load %arg5[%c0_22, %c1_23, %c0_24] : memref<18x24x4xf32, #tpu.memory_space<vmem>>, vector<16x16x4xf32>
    %c1_25 = arith.constant 1 : index
    %c0_26 = arith.constant 0 : index
    %16 = vector.load %arg3[%c1_25, %c0_26] : memref<12x4xf32, #tpu.memory_space<vmem>>, vector<1x4xf32>
    %17 = vector.shape_cast %16 : vector<1x4xf32> to vector<4xf32>
    %18 = vector.shape_cast %17 : vector<4xf32> to vector<1x1x4xf32>
    %19 = vector.broadcast %18 : vector<1x1x4xf32> to vector<16x16x4xf32>
    %20 = arith.mulf %15, %19 : vector<16x16x4xf32>
    %21 = arith.addf %14, %20 : vector<16x16x4xf32>
    %c0_27 = arith.constant 0 : index
    %c2 = arith.constant 2 : index
    %c0_28 = arith.constant 0 : index
    %22 = vector.load %arg5[%c0_27, %c2, %c0_28] : memref<18x24x4xf32, #tpu.memory_space<vmem>>, vector<16x16x4xf32>
    %c2_29 = arith.constant 2 : index
    %c0_30 = arith.constant 0 : index
    %23 = vector.load %arg3[%c2_29, %c0_30] : memref<12x4xf32, #tpu.memory_space<vmem>>, vector<1x4xf32>
    %24 = vector.shape_cast %23 : vector<1x4xf32> to vector<4xf32>
    %25 = vector.shape_cast %24 : vector<4xf32> to vector<1x1x4xf32>
    %26 = vector.broadcast %25 : vector<1x1x4xf32> to vector<16x16x4xf32>
    %27 = arith.mulf %22, %26 : vector<16x16x4xf32>
    %28 = arith.addf %21, %27 : vector<16x16x4xf32>
    %c1_31 = arith.constant 1 : index
    %c0_32 = arith.constant 0 : index
    %c0_33 = arith.constant 0 : index
    %29 = vector.load %arg5[%c1_31, %c0_32, %c0_33] : memref<18x24x4xf32, #tpu.memory_space<vmem>>, vector<16x16x4xf32>
    %c3 = arith.constant 3 : index
    %c0_34 = arith.constant 0 : index
    %30 = vector.load %arg3[%c3, %c0_34] : memref<12x4xf32, #tpu.memory_space<vmem>>, vector<1x4xf32>
    %31 = vector.shape_cast %30 : vector<1x4xf32> to vector<4xf32>
    %32 = vector.shape_cast %31 : vector<4xf32> to vector<1x1x4xf32>
    %33 = vector.broadcast %32 : vector<1x1x4xf32> to vector<16x16x4xf32>
    %34 = arith.mulf %29, %33 : vector<16x16x4xf32>
    %35 = arith.addf %28, %34 : vector<16x16x4xf32>
    %c1_35 = arith.constant 1 : index
    %c1_36 = arith.constant 1 : index
    %c0_37 = arith.constant 0 : index
    %36 = vector.load %arg5[%c1_35, %c1_36, %c0_37] : memref<18x24x4xf32, #tpu.memory_space<vmem>>, vector<16x16x4xf32>
    %c4 = arith.constant 4 : index
    %c0_38 = arith.constant 0 : index
    %37 = vector.load %arg3[%c4, %c0_38] : memref<12x4xf32, #tpu.memory_space<vmem>>, vector<1x4xf32>
    %38 = vector.shape_cast %37 : vector<1x4xf32> to vector<4xf32>
    %39 = vector.shape_cast %38 : vector<4xf32> to vector<1x1x4xf32>
    %40 = vector.broadcast %39 : vector<1x1x4xf32> to vector<16x16x4xf32>
    %41 = arith.mulf %36, %40 : vector<16x16x4xf32>
    %42 = arith.addf %35, %41 : vector<16x16x4xf32>
    %c1_39 = arith.constant 1 : index
    %c2_40 = arith.constant 2 : index
    %c0_41 = arith.constant 0 : index
    %43 = vector.load %arg5[%c1_39, %c2_40, %c0_41] : memref<18x24x4xf32, #tpu.memory_space<vmem>>, vector<16x16x4xf32>
    %c5 = arith.constant 5 : index
    %c0_42 = arith.constant 0 : index
    %44 = vector.load %arg3[%c5, %c0_42] : memref<12x4xf32, #tpu.memory_space<vmem>>, vector<1x4xf32>
    %45 = vector.shape_cast %44 : vector<1x4xf32> to vector<4xf32>
    %46 = vector.shape_cast %45 : vector<4xf32> to vector<1x1x4xf32>
    %47 = vector.broadcast %46 : vector<1x1x4xf32> to vector<16x16x4xf32>
    %48 = arith.mulf %43, %47 : vector<16x16x4xf32>
    %49 = arith.addf %42, %48 : vector<16x16x4xf32>
    %c2_43 = arith.constant 2 : index
    %c0_44 = arith.constant 0 : index
    %c0_45 = arith.constant 0 : index
    %50 = vector.load %arg5[%c2_43, %c0_44, %c0_45] : memref<18x24x4xf32, #tpu.memory_space<vmem>>, vector<16x16x4xf32>
    %c6 = arith.constant 6 : index
    %c0_46 = arith.constant 0 : index
    %51 = vector.load %arg3[%c6, %c0_46] : memref<12x4xf32, #tpu.memory_space<vmem>>, vector<1x4xf32>
    %52 = vector.shape_cast %51 : vector<1x4xf32> to vector<4xf32>
    %53 = vector.shape_cast %52 : vector<4xf32> to vector<1x1x4xf32>
    %54 = vector.broadcast %53 : vector<1x1x4xf32> to vector<16x16x4xf32>
    %55 = arith.mulf %50, %54 : vector<16x16x4xf32>
    %56 = arith.addf %49, %55 : vector<16x16x4xf32>
    %c2_47 = arith.constant 2 : index
    %c1_48 = arith.constant 1 : index
    %c0_49 = arith.constant 0 : index
    %57 = vector.load %arg5[%c2_47, %c1_48, %c0_49] : memref<18x24x4xf32, #tpu.memory_space<vmem>>, vector<16x16x4xf32>
    %c7 = arith.constant 7 : index
    %c0_50 = arith.constant 0 : index
    %58 = vector.load %arg3[%c7, %c0_50] : memref<12x4xf32, #tpu.memory_space<vmem>>, vector<1x4xf32>
    %59 = vector.shape_cast %58 : vector<1x4xf32> to vector<4xf32>
    %60 = vector.shape_cast %59 : vector<4xf32> to vector<1x1x4xf32>
    %61 = vector.broadcast %60 : vector<1x1x4xf32> to vector<16x16x4xf32>
    %62 = arith.mulf %57, %61 : vector<16x16x4xf32>
    %63 = arith.addf %56, %62 : vector<16x16x4xf32>
    %c2_51 = arith.constant 2 : index
    %c2_52 = arith.constant 2 : index
    %c0_53 = arith.constant 0 : index
    %64 = vector.load %arg5[%c2_51, %c2_52, %c0_53] : memref<18x24x4xf32, #tpu.memory_space<vmem>>, vector<16x16x4xf32>
    %c8 = arith.constant 8 : index
    %c0_54 = arith.constant 0 : index
    %65 = vector.load %arg3[%c8, %c0_54] : memref<12x4xf32, #tpu.memory_space<vmem>>, vector<1x4xf32>
    %66 = vector.shape_cast %65 : vector<1x4xf32> to vector<4xf32>
    %67 = vector.shape_cast %66 : vector<4xf32> to vector<1x1x4xf32>
    %68 = vector.broadcast %67 : vector<1x1x4xf32> to vector<16x16x4xf32>
    %69 = arith.mulf %64, %68 : vector<16x16x4xf32>
    %70 = arith.addf %63, %69 : vector<16x16x4xf32>
    %c9 = arith.constant 9 : index
    %c0_55 = arith.constant 0 : index
    %71 = vector.load %arg3[%c9, %c0_55] : memref<12x4xf32, #tpu.memory_space<vmem>>, vector<1x4xf32>
    %72 = vector.shape_cast %71 : vector<1x4xf32> to vector<4xf32>
    %73 = vector.shape_cast %72 : vector<4xf32> to vector<1x1x4xf32>
    %74 = vector.broadcast %73 : vector<1x1x4xf32> to vector<16x16x4xf32>
    %75 = arith.addf %70, %74 : vector<16x16x4xf32>
    %76 = arith.mulf %75, %75 : vector<16x16x4xf32>
    %77 = arith.mulf %75, %76 : vector<16x16x4xf32>
    %cst_56 = arith.constant 4.471500e-02 : f32
    %78 = vector.broadcast %cst_56 : f32 to vector<16x16x4xf32>
    %79 = arith.mulf %78, %77 : vector<16x16x4xf32>
    %80 = arith.addf %75, %79 : vector<16x16x4xf32>
    %cst_57 = arith.constant 0.797884583 : f32
    %81 = vector.broadcast %cst_57 : f32 to vector<16x16x4xf32>
    %82 = arith.mulf %81, %80 : vector<16x16x4xf32>
    %83 = math.tanh %82 : vector<16x16x4xf32>
    %cst_58 = arith.constant 1.000000e+00 : f32
    %84 = vector.broadcast %cst_58 : f32 to vector<16x16x4xf32>
    %85 = arith.addf %84, %83 : vector<16x16x4xf32>
    %cst_59 = arith.constant 5.000000e-01 : f32
    %86 = vector.broadcast %cst_59 : f32 to vector<16x16x4xf32>
    %87 = arith.mulf %86, %85 : vector<16x16x4xf32>
    %88 = arith.mulf %75, %87 : vector<16x16x4xf32>
    %c10 = arith.constant 10 : index
    %c0_60 = arith.constant 0 : index
    %89 = vector.load %arg3[%c10, %c0_60] : memref<12x4xf32, #tpu.memory_space<vmem>>, vector<1x4xf32>
    %90 = vector.shape_cast %89 : vector<1x4xf32> to vector<4xf32>
    %91 = vector.shape_cast %90 : vector<4xf32> to vector<1x1x4xf32>
    %92 = vector.broadcast %91 : vector<1x1x4xf32> to vector<16x16x4xf32>
    %93 = arith.mulf %88, %92 : vector<16x16x4xf32>
    %c11 = arith.constant 11 : index
    %c0_61 = arith.constant 0 : index
    %94 = vector.load %arg3[%c11, %c0_61] : memref<12x4xf32, #tpu.memory_space<vmem>>, vector<1x4xf32>
    %95 = vector.shape_cast %94 : vector<1x4xf32> to vector<4xf32>
    %96 = vector.shape_cast %95 : vector<4xf32> to vector<1x1x4xf32>
    %97 = vector.broadcast %96 : vector<1x1x4xf32> to vector<16x16x4xf32>
    %98 = arith.addf %93, %97 : vector<16x16x4xf32>
    %99 = arith.addf %98, %1 : vector<16x16x4xf32>
    %c0_62 = arith.constant 0 : index
    %c0_63 = arith.constant 0 : index
    %c0_64 = arith.constant 0 : index
    %c0_65 = arith.constant 0 : index
    %100 = vector.load %arg4[%c0_62, %c0_63, %c0_64, %c0_65] : memref<1x16x16x4xf32, #tpu.memory_space<vmem>>, vector<1x16x16x4xf32>
    %101 = vector.shape_cast %100 : vector<1x16x16x4xf32> to vector<16x16x4xf32>
    %102 = vector.shape_cast %99 : vector<16x16x4xf32> to vector<1x16x16x4xf32>
    tpu.vector_store %arg4[%c0_62, %c0_63, %c0_64, %c0_65], %102 {strides = array<i32>} : memref<1x16x16x4xf32, #tpu.memory_space<vmem>>, vector<1x16x16x4xf32>,
    return
  }
  func.func @transform_0(%arg0: i32, %arg1: i32) -> (i32, i32, i32, i32) {
    %c0_i32 = arith.constant 0 : i32
    %c0_i32_0 = arith.constant 0 : i32
    %c0_i32_1 = arith.constant 0 : i32
    return %arg0, %c0_i32, %c0_i32_0, %arg1 : i32, i32, i32, i32
  }
  func.func @transform_1(%arg0: i32, %arg1: i32) -> (i32, i32) {
    %c0_i32 = arith.constant 0 : i32
    %c0_i32_0 = arith.constant 0 : i32
    return %c0_i32, %arg1 : i32, i32
  }
  func.func @transform_2(%arg0: i32, %arg1: i32) -> (i32, i32, i32, i32) {
    %c0_i32 = arith.constant 0 : i32
    %c0_i32_0 = arith.constant 0 : i32
    %c0_i32_1 = arith.constant 0 : i32
    return %arg0, %c0_i32, %c0_i32_0, %arg1 : i32, i32, i32, i32
  }
}

</mosaic_0001>

<llo_original>
// kernel: tpu_custom_call.1
$region0: #{tpu_custom_call.1}
  #allocation0 [shape = 'u32[]', space=smem, size = 0x4, offset = 0x4, fixed_abs, tag = 'smem constant byte address 0x4 - core index']
  #allocation1 [shape = 'u32[144,128]{1,0:T(1,128)}', space=vmem, size = 0x12000, scoped, tag = 'internal scratch']
  #allocation2 [shape = 'f32[18,24,4]{2,1,0:T(8,128)}', space=vmem, size = 0x36000, scoped, tag = 'scratch operand']
  %s0 = inlined_call_operand.vmem [shape: f32[2,16,16,4], index: 0, kind: input, shape index: {}]
  %s1 = inlined_call_operand.vmem [shape: f32[12,4], index: 1, kind: input, shape index: {}]
  %s2 = inlined_call_operand.vmem [shape: f32[2,16,16,4], index: 2, kind: output, shape index: {}]
  %s3 = sld [smem:[#allocation0]]
  $region41: #{tpu_custom_call.1} parent=0
    _
  %s5 = ssub.s32 1, %s3
  %s6 = scalar_select 0, %s5, %s3
  loop: start=0, step=1, limit=4
  $region2: #{tpu_custom_call.1} parent=0 // loop_pre_header
    _
  $region3: #{tpu_custom_call.1} parent=0 // loop_header
    %s8 = sphi 0, %s12
    %p9 = scmp.ge.s32.totalorder %s8, 4
    %s15 = sphi 0, %s27
    %s16 = sphi 0, %s23
    %s17 = sphi 0, %s15
    %s18 = sphi 0, %s16
    %s19 = sphi 0, %s17
    %s20 = sphi 0, %s18
    %s32 = sphi 0, %s34
    %s35 = sphi 0, %s32
    %s36 = sphi 0, %s35
    %s52 = sphi 0, %s36
    %s58 = sphi 0, %s60
    %s61 = sphi 0, %s58
    %s62 = sphi 0, %s61
    %s78 = sphi 0, %s62
    %s86 = sphi 0, %s88
    %s89 = sphi 0, %s86
    %s90 = sphi 0, %s89
    %s106 = sphi 0, %s90
  $region4: #{tpu_custom_call.1} parent=0 // loop_header_branch
    %11 = sbr.rel (%p9) target = $region8
  $region5: #{tpu_custom_call.1} parent=0 // loop_body
    %s13 = ssub.s32 %s8, 1
    %s14 = ssub.s32 %s8, 2
    %s21 = sadd.s32 1, %s16
    %p22 = scmp.ge.s32.totalorder %s21, 1
    %s23 = scalar_select %p22, 0, %s21
    %s24 = sadd.s32 1, %s15
    %s25 = scalar_select %p22, %s24, %s15
    %p26 = scmp.ge.s32.totalorder %s25, 2
    %s27 = scalar_select %p26, 0, %s25
    %s28 = ssub.s32 %s15, %s27
    %s29 = ssub.s32 %s16, %s23
    %s30 = sor.u32 %s28, %s29
    %p31 = scmp.eq.s32.totalorder %s30, 0
    %s33 = sadd.s32 %s32, 1
    %s34 = scalar_select %p31, %s32, %s33
    %p37 = pneg %p31
    %p38 = scmp.eq.s32.totalorder %s8, 1
    %p39 = por %p37, %p38
    %p40 = scmp.ne.s32.totalorder %s32, %s35
    %p41 = scmp.eq.s32.totalorder %s8, 0
    %p42 = por %p40, %p41
    %p43 = scmp.ne.s32.totalorder %s32, %s35
    %p44 = scmp.eq.s32.totalorder %s13, 1
    %p45 = por %p43, %p44
    %p46 = scmp.ne.s32.totalorder %s35, %s36
    %p47 = scmp.eq.s32.totalorder %s13, 0
    %p48 = por %p46, %p47
    %p49 = scmp.ne.s32.totalorder %s35, %s36
    %p50 = scmp.eq.s32.totalorder %s14, 1
    %p51 = por %p49, %p50
    %p53 = scmp.ne.s32.totalorder %s36, %s52
    %p54 = scmp.eq.s32.totalorder %s14, 0
    %p55 = por %p53, %p54
    %s56 = ssub.s32 %s16, %s23
    %p57 = scmp.eq.s32.totalorder %s56, 0
    %s59 = sadd.s32 %s58, 1
    %s60 = scalar_select %p57, %s58, %s59
    %p63 = pneg %p57
    %p64 = scmp.eq.s32.totalorder %s8, 1
    %p65 = por %p63, %p64
    %p66 = scmp.ne.s32.totalorder %s58, %s61
    %p67 = scmp.eq.s32.totalorder %s8, 0
    %p68 = por %p66, %p67
    %p69 = scmp.ne.s32.totalorder %s58, %s61
    %p70 = scmp.eq.s32.totalorder %s13, 1
    %p71 = por %p69, %p70
    %p72 = scmp.ne.s32.totalorder %s61, %s62
    %p73 = scmp.eq.s32.totalorder %s13, 0
    %p74 = por %p72, %p73
    %p75 = scmp.ne.s32.totalorder %s61, %s62
    %p76 = scmp.eq.s32.totalorder %s14, 1
    %p77 = por %p75, %p76
    %p79 = scmp.ne.s32.totalorder %s62, %s78
    %p80 = scmp.eq.s32.totalorder %s14, 0
    %p81 = por %p79, %p80
    %s82 = ssub.s32 %s15, %s27
    %s83 = ssub.s32 %s16, %s23
    %s84 = sor.u32 %s82, %s83
    %p85 = scmp.eq.s32.totalorder %s84, 0
    %s87 = sadd.s32 %s86, 1
    %s88 = scalar_select %p85, %s86, %s87
    %p91 = pneg %p85
    %p92 = scmp.eq.s32.totalorder %s8, 1
    %p93 = por %p91, %p92
    %p94 = scmp.ne.s32.totalorder %s86, %s89
    %p95 = scmp.eq.s32.totalorder %s8, 0
    %p96 = por %p94, %p95
    %p97 = scmp.ne.s32.totalorder %s86, %s89
    %p98 = scmp.eq.s32.totalorder %s13, 1
    %p99 = por %p97, %p98
    %p100 = scmp.ne.s32.totalorder %s89, %s90
    %p101 = scmp.eq.s32.totalorder %s13, 0
    %p102 = por %p100, %p101
    %p103 = scmp.ne.s32.totalorder %s89, %s90
    %p104 = scmp.eq.s32.totalorder %s14, 1
    %p105 = por %p103, %p104
    %p107 = scmp.ne.s32.totalorder %s90, %s106
    %p108 = scmp.eq.s32.totalorder %s14, 0
    %p109 = por %p107, %p108
    %p110 = scmp.le.s32.totalorder 1, %s8
    %p111 = scmp.lt.s32.totalorder %s8, 3
    %p112 = pnand %p110, %p111
    %p113 = pneg %p112
    // Predicated region
    $region9: #{tpu_custom_call.1} parent=5 // pred_check
      _
    $region10: #{tpu_custom_call.1} parent=5 // pred_check_branch
      %115 = sbr.rel (%p112) target = $region12
    $region11: #{tpu_custom_call.1} parent=5 // pred_region
      %s116 = ssub.s32 %s8, 1
      // Predicated region
      $region13: #{tpu_custom_call.1} parent=11 // pred_check
        %p117 = pneg %p74
      $region14: #{tpu_custom_call.1} parent=11 // pred_check_branch
        %119 = sbr.rel (%p117) target = $region16
      $region15: #{tpu_custom_call.1} parent=11 // pred_region
        %p120 = scmp.lt.s32.totalorder %s18, 0
        %s121 = scalar_select %p120, %s18, 0
        %s122 = smul.addr %s121, 8
        %s123 = scalar_lea.vmem %s1, %s122
      $region16: #{tpu_custom_call.1} parent=11 // pred_fallthru
        _
    $region12: #{tpu_custom_call.1} parent=5 // pred_fallthru
      _
    %p124 = scmp.lt.s32.totalorder %s8, 2
    // Predicated region
    $region17: #{tpu_custom_call.1} parent=5 // pred_check
      %p125 = pneg %p124
    $region18: #{tpu_custom_call.1} parent=5 // pred_check_branch
      %127 = sbr.rel (%p125) target = $region20
    $region19: #{tpu_custom_call.1} parent=5 // pred_region
      // Predicated region
      $region21: #{tpu_custom_call.1} parent=19 // pred_check
        %p128 = pneg %p42
      $region22: #{tpu_custom_call.1} parent=19 // pred_check_branch
        %130 = sbr.rel (%p128) target = $region24
      $region23: #{tpu_custom_call.1} parent=19 // pred_region
        %p131 = scmp.lt.s32.totalorder %s15, 1
        %s132 = scalar_select %p131, %s15, 1
        %p133 = scmp.lt.s32.totalorder %s16, 0
        %s134 = scalar_select %p133, %s16, 0
        %s135 = smul.addr %s132, 32
        %s136 = sadd.s32 %s134, %s135
        %s137 = smul.addr %s136, 8
        %s138 = scalar_lea.vmem %s0, %s137
      $region24: #{tpu_custom_call.1} parent=19 // pred_fallthru
        _
    $region20: #{tpu_custom_call.1} parent=5 // pred_fallthru
      _
    %p139 = scmp.le.s32.totalorder 1, %s8
    %p140 = scmp.lt.s32.totalorder %s8, 3
    %p141 = pnand %p139, %p140
    %p142 = pneg %p141
    // Predicated region
    $region25: #{tpu_custom_call.1} parent=5 // pred_check
      _
    $region26: #{tpu_custom_call.1} parent=5 // pred_check_branch
      %144 = sbr.rel (%p141) target = $region28
    $region27: #{tpu_custom_call.1} parent=5 // pred_region
      %s145 = ssub.s32 %s8, 1
      %p146 = scmp.lt.s32.totalorder %s17, 1
      %s147 = scalar_select %p146, %s17, 1
      %p148 = scmp.lt.s32.totalorder %s18, 0
      %s149 = scalar_select %p148, %s18, 0
      %s150 = smul.addr %s147, 32
      %s151 = sadd.s32 %s149, %s150
      %s152 = smul.addr %s151, 8
      %s153 = scalar_lea.vmem %s0, %s152
      %p154 = pneg %p48
      %p155 = pneg %p45
      %p156 = scmp.lt.s32.totalorder %s18, 0
      %s157 = scalar_select %p156, %s18, 0
      %s158 = smul.addr %s157, 8
      %s159 = scalar_lea.vmem %s1, %s158
      %p160 = pneg %p74
      %p161 = pneg %p71
      %p162 = pneg %p102
      %p163 = pneg %p99
      %p164 = scmp.lt.s32.totalorder %s17, 1
      %s165 = scalar_select %p164, %s17, 1
      %p166 = scmp.lt.s32.totalorder %s18, 0
      %s167 = scalar_select %p166, %s18, 0
      %s168 = smul.addr %s165, 32
      %s169 = sadd.s32 %s167, %s168
      %s170 = smul.addr %s169, 8
      %s171 = scalar_lea.vmem %s2, %s170
      %p172 = scmp.lt.s32.totalorder %s17, 1
      %s173 = scalar_select %p172, %s17, 1
      %p174 = scmp.lt.s32.totalorder %s18, 0
      %s175 = scalar_select %p174, %s18, 0
      %s176 = smul.addr %s173, 32
      %s177 = sadd.s32 %s175, %s176
      %s178 = smul.addr %s177, 8
      %s179 = scalar_lea.vmem %s0, %s178
      %p180 = scmp.lt.s32.totalorder %s18, 0
      %s181 = scalar_select %p180, %s18, 0
      %s182 = smul.addr %s181, 8
      %s183 = scalar_lea.vmem %s1, %s182
      %p184 = scmp.lt.s32.totalorder %s17, 1
      %s185 = scalar_select %p184, %s17, 1
      %p186 = scmp.lt.s32.totalorder %s18, 0
      %s187 = scalar_select %p186, %s18, 0
      %s188 = smul.addr %s185, 32
      %s189 = sadd.s32 %s187, %s188
      %s190 = smul.addr %s189, 8
      %s191 = scalar_lea.vmem %s2, %s190
      %v192 = vld [vmem:[%s179] sm:$0xff]
      %v193 = vld [vmem:[%s179 + $0x8] sm:$0xff]
      %v194 = vld [vmem:[%s179 + $0x10] sm:$0xff]
      %v195 = vld [vmem:[%s179 + $0x18] sm:$0xff]
      %v196 = vld [vmem:[%s179 + $0x20] sm:$0xff]
      %v197 = vld [vmem:[%s179 + $0x28] sm:$0xff]
      %v198 = vld [vmem:[%s179 + $0x30] sm:$0xff]
      %v199 = vld [vmem:[%s179 + $0x38] sm:$0xff]
      %v200 = vld [vmem:[%s179 + $0x40] sm:$0xff]
      %v201 = vld [vmem:[%s179 + $0x48] sm:$0xff]
      %v202 = vld [vmem:[%s179 + $0x50] sm:$0xff]
      %v203 = vld [vmem:[%s179 + $0x58] sm:$0xff]
      %v204 = vld [vmem:[%s179 + $0x60] sm:$0xff]
      %v205 = vld [vmem:[%s179 + $0x68] sm:$0xff]
      %v206 = vld [vmem:[%s179 + $0x70] sm:$0xff]
      %v207 = vld [vmem:[%s179 + $0x78] sm:$0xff]
      %v208 = vld [vmem:[%s179 + $0x80] sm:$0xff]
      %v209 = vld [vmem:[%s179 + $0x88] sm:$0xff]
      %v210 = vld [vmem:[%s179 + $0x90] sm:$0xff]
      %v211 = vld [vmem:[%s179 + $0x98] sm:$0xff]
      %v212 = vld [vmem:[%s179 + $0xa0] sm:$0xff]
      %v213 = vld [vmem:[%s179 + $0xa8] sm:$0xff]
      %v214 = vld [vmem:[%s179 + $0xb0] sm:$0xff]
      %v215 = vld [vmem:[%s179 + $0xb8] sm:$0xff]
      %v216 = vld [vmem:[%s179 + $0xc0] sm:$0xff]
      %v217 = vld [vmem:[%s179 + $0xc8] sm:$0xff]
      %v218 = vld [vmem:[%s179 + $0xd0] sm:$0xff]
      %v219 = vld [vmem:[%s179 + $0xd8] sm:$0xff]
      %v220 = vld [vmem:[%s179 + $0xe0] sm:$0xff]
      %v221 = vld [vmem:[%s179 + $0xe8] sm:$0xff]
      %v222 = vld [vmem:[%s179 + $0xf0] sm:$0xff]
      %v223 = vld [vmem:[%s179 + $0xf8] sm:$0xff]
      %vm224 = vcmask 31744
      %225 = vst.msk [vmem:[#allocation2] sm:$0xff] %vm224, 0.0
      %226 = vst.msk [vmem:[#allocation2 + $0x8] sm:$0xff] %vm224, 0.0
      %vm227 = vcmask 25600
      %228 = vst.msk [vmem:[#allocation2 + $0x10] sm:$0x3] %vm227, 0.0
      %s229 = scalar_lea.vmem [#allocation2], 408
      %230 = vst.msk [vmem:[%s229] sm:$0xff] %vm224, 0.0
      %231 = vst.msk [vmem:[%s229 + $0x8] sm:$0xff] %vm224, 0.0
      %232 = vst.msk [vmem:[%s229 + $0x10] sm:$0x3] %vm227, 0.0
      %s233 = scalar_lea.vmem [#allocation2], 24
      %vm234 = vcmask 24576
      %235 = vst.msk [vmem:[%s233] sm:$0x1] %vm234, 0.0
      %236 = vst.msk [vmem:[%s233 + $0x18] sm:$0x1] %vm234, 0.0
      %237 = vst.msk [vmem:[%s233 + $0x30] sm:$0x1] %vm234, 0.0
      %238 = vst.msk [vmem:[%s233 + $0x48] sm:$0x1] %vm234, 0.0
      %239 = vst.msk [vmem:[%s233 + $0x60] sm:$0x1] %vm234, 0.0
      %240 = vst.msk [vmem:[%s233 + $0x78] sm:$0x1] %vm234, 0.0
      %241 = vst.msk [vmem:[%s233 + $0x90] sm:$0x1] %vm234, 0.0
      %242 = vst.msk [vmem:[%s233 + $0xa8] sm:$0x1] %vm234, 0.0
      %243 = vst.msk [vmem:[%s233 + $0xc0] sm:$0x1] %vm234, 0.0
      %244 = vst.msk [vmem:[%s233 + $0xd8] sm:$0x1] %vm234, 0.0
      %245 = vst.msk [vmem:[%s233 + $0xf0] sm:$0x1] %vm234, 0.0
      %246 = vst.msk [vmem:[%s233 + $0x108] sm:$0x1] %vm234, 0.0
      %247 = vst.msk [vmem:[%s233 + $0x120] sm:$0x1] %vm234, 0.0
      %248 = vst.msk [vmem:[%s233 + $0x138] sm:$0x1] %vm234, 0.0
      %249 = vst.msk [vmem:[%s233 + $0x150] sm:$0x1] %vm234, 0.0
      %250 = vst.msk [vmem:[%s233 + $0x168] sm:$0x1] %vm234, 0.0
      %251 = vst.msk [vmem:[%s233 + $0x11] sm:$0x1] %vm234, 0.0
      %252 = vst.msk [vmem:[%s233 + $0x29] sm:$0x1] %vm234, 0.0
      %253 = vst.msk [vmem:[%s233 + $0x41] sm:$0x1] %vm234, 0.0
      %254 = vst.msk [vmem:[%s233 + $0x59] sm:$0x1] %vm234, 0.0
      %255 = vst.msk [vmem:[%s233 + $0x71] sm:$0x1] %vm234, 0.0
      %256 = vst.msk [vmem:[%s233 + $0x89] sm:$0x1] %vm234, 0.0
      %257 = vst.msk [vmem:[%s233 + $0xa1] sm:$0x1] %vm234, 0.0
      %258 = vst.msk [vmem:[%s233 + $0xb9] sm:$0x1] %vm234, 0.0
      %259 = vst.msk [vmem:[%s233 + $0xd1] sm:$0x1] %vm234, 0.0
      %260 = vst.msk [vmem:[%s233 + $0xe9] sm:$0x1] %vm234, 0.0
      %261 = vst.msk [vmem:[%s233 + $0x101] sm:$0x1] %vm234, 0.0
      %262 = vst.msk [vmem:[%s233 + $0x119] sm:$0x1] %vm234, 0.0
      %263 = vst.msk [vmem:[%s233 + $0x131] sm:$0x1] %vm234, 0.0
      %264 = vst.msk [vmem:[%s233 + $0x149] sm:$0x1] %vm234, 0.0
      %265 = vst.msk [vmem:[%s233 + $0x161] sm:$0x1] %vm234, 0.0
      %266 = vst.msk [vmem:[%s233 + $0x179] sm:$0x1] %vm234, 0.0
      %267 = vst.msk [vmem:[%s233 + $0x1] sm:$0xff] %vm224, %v192
      %268 = vst.msk [vmem:[%s233 + $0x9] sm:$0xff] %vm224, %v193
      %269 = vst.msk [vmem:[%s233 + $0x19] sm:$0xff] %vm224, %v194
      %270 = vst.msk [vmem:[%s233 + $0x21] sm:$0xff] %vm224, %v195
      %271 = vst.msk [vmem:[%s233 + $0x31] sm:$0xff] %vm224, %v196
      %272 = vst.msk [vmem:[%s233 + $0x39] sm:$0xff] %vm224, %v197
      %273 = vst.msk [vmem:[%s233 + $0x49] sm:$0xff] %vm224, %v198
      %274 = vst.msk [vmem:[%s233 + $0x51] sm:$0xff] %vm224, %v199
      %275 = vst.msk [vmem:[%s233 + $0x61] sm:$0xff] %vm224, %v200
      %276 = vst.msk [vmem:[%s233 + $0x69] sm:$0xff] %vm224, %v201
      %277 = vst.msk [vmem:[%s233 + $0x79] sm:$0xff] %vm224, %v202
      %278 = vst.msk [vmem:[%s233 + $0x81] sm:$0xff] %vm224, %v203
      %279 = vst.msk [vmem:[%s233 + $0x91] sm:$0xff] %vm224, %v204
      %280 = vst.msk [vmem:[%s233 + $0x99] sm:$0xff] %vm224, %v205
      %281 = vst.msk [vmem:[%s233 + $0xa9] sm:$0xff] %vm224, %v206
      %282 = vst.msk [vmem:[%s233 + $0xb1] sm:$0xff] %vm224, %v207
      %283 = vst.msk [vmem:[%s233 + $0xc1] sm:$0xff] %vm224, %v208
      %284 = vst.msk [vmem:[%s233 + $0xc9] sm:$0xff] %vm224, %v209
      %285 = vst.msk [vmem:[%s233 + $0xd9] sm:$0xff] %vm224, %v210
      %286 = vst.msk [vmem:[%s233 + $0xe1] sm:$0xff] %vm224, %v211
      %287 = vst.msk [vmem:[%s233 + $0xf1] sm:$0xff] %vm224, %v212
      %288 = vst.msk [vmem:[%s233 + $0xf9] sm:$0xff] %vm224, %v213
      %289 = vst.msk [vmem:[%s233 + $0x109] sm:$0xff] %vm224, %v214
      %290 = vst.msk [vmem:[%s233 + $0x111] sm:$0xff] %vm224, %v215
      %291 = vst.msk [vmem:[%s233 + $0x121] sm:$0xff] %vm224, %v216
      %292 = vst.msk [vmem:[%s233 + $0x129] sm:$0xff] %vm224, %v217
      %293 = vst.msk [vmem:[%s233 + $0x139] sm:$0xff] %vm224, %v218
      %294 = vst.msk [vmem:[%s233 + $0x141] sm:$0xff] %vm224, %v219
      %295 = vst.msk [vmem:[%s233 + $0x151] sm:$0xff] %vm224, %v220
      %296 = vst.msk [vmem:[%s233 + $0x159] sm:$0xff] %vm224, %v221
      %297 = vst.msk [vmem:[%s233 + $0x169] sm:$0xff] %vm224, %v222
      %298 = vst.msk [vmem:[%s233 + $0x171] sm:$0xff] %vm224, %v223
      %v299 = vld [vmem:[#allocation2] sm:$0xff]
      %v300 = vld [vmem:[#allocation2 + $0x8] sm:$0xff]
      %v301 = vld [vmem:[#allocation2 + $0x18] sm:$0xff]
      %v302 = vld [vmem:[#allocation2 + $0x20] sm:$0xff]
      %v303 = vld [vmem:[#allocation2 + $0x30] sm:$0xff]
      %v304 = vld [vmem:[#allocation2 + $0x38] sm:$0xff]
      %v305 = vld [vmem:[#allocation2 + $0x48] sm:$0xff]
      %v306 = vld [vmem:[#allocation2 + $0x50] sm:$0xff]
      %v307 = vld [vmem:[#allocation2 + $0x60] sm:$0xff]
      %v308 = vld [vmem:[#allocation2 + $0x68] sm:$0xff]
      %v309 = vld [vmem:[#allocation2 + $0x78] sm:$0xff]
      %v310 = vld [vmem:[#allocation2 + $0x80] sm:$0xff]
      %v311 = vld [vmem:[#allocation2 + $0x90] sm:$0xff]
      %v312 = vld [vmem:[#allocation2 + $0x98] sm:$0xff]
      %v313 = vld [vmem:[#allocation2 + $0xa8] sm:$0xff]
      %v314 = vld [vmem:[#allocation2 + $0xb0] sm:$0xff]
      %v315 = vld [vmem:[#allocation2 + $0xc0] sm:$0xff]
      %v316 = vld [vmem:[#allocation2 + $0xc8] sm:$0xff]
      %v317 = vld [vmem:[#allocation2 + $0xd8] sm:$0xff]
      %v318 = vld [vmem:[#allocation2 + $0xe0] sm:$0xff]
      %v319 = vld [vmem:[#allocation2 + $0xf0] sm:$0xff]
      %v320 = vld [vmem:[#allocation2 + $0xf8] sm:$0xff]
      %v321 = vld [vmem:[#allocation2 + $0x108] sm:$0xff]
      %v322 = vld [vmem:[#allocation2 + $0x110] sm:$0xff]
      %v323 = vld [vmem:[#allocation2 + $0x120] sm:$0xff]
      %v324 = vld [vmem:[#allocation2 + $0x128] sm:$0xff]
      %v325 = vld [vmem:[#allocation2 + $0x138] sm:$0xff]
      %v326 = vld [vmem:[#allocation2 + $0x140] sm:$0xff]
      %v327 = vld [vmem:[#allocation2 + $0x150] sm:$0xff]
      %v328 = vld [vmem:[#allocation2 + $0x158] sm:$0xff]
      %v329 = vld [vmem:[#allocation2 + $0x168] sm:$0xff]
      %v330 = vld [vmem:[#allocation2 + $0x170] sm:$0xff]
      %v331 = vld [vmem:[%s183] sm:$0x1]
      %v332 = vlaneseq
      %v333 = vshrl.u32 %v332, 7
      %v334 = vsub.s32 0, %v333
      %v335 = vrot.slane %v331, %v334
      %v336 = vmul.f32 %v299, %v335
      %v337 = vmul.f32 %v300, %v335
      %v338 = vmul.f32 %v301, %v335
      %v339 = vmul.f32 %v302, %v335
      %v340 = vmul.f32 %v303, %v335
      %v341 = vmul.f32 %v304, %v335
      %v342 = vmul.f32 %v305, %v335
      %v343 = vmul.f32 %v306, %v335
      %v344 = vmul.f32 %v307, %v335
      %v345 = vmul.f32 %v308, %v335
      %v346 = vmul.f32 %v309, %v335
      %v347 = vmul.f32 %v310, %v335
      %v348 = vmul.f32 %v311, %v335
      %v349 = vmul.f32 %v312, %v335
      %v350 = vmul.f32 %v313, %v335
      %v351 = vmul.f32 %v314, %v335
      %v352 = vmul.f32 %v315, %v335
      %v353 = vmul.f32 %v316, %v335
      %v354 = vmul.f32 %v317, %v335
      %v355 = vmul.f32 %v318, %v335
      %v356 = vmul.f32 %v319, %v335
      %v357 = vmul.f32 %v320, %v335
      %v358 = vmul.f32 %v321, %v335
      %v359 = vmul.f32 %v322, %v335
      %v360 = vmul.f32 %v323, %v335
      %v361 = vmul.f32 %v324, %v335
      %v362 = vmul.f32 %v325, %v335
      %v363 = vmul.f32 %v326, %v335
      %v364 = vmul.f32 %v327, %v335
      %v365 = vmul.f32 %v328, %v335
      %v366 = vmul.f32 %v329, %v335
      %v367 = vmul.f32 %v330, %v335
      %v368 = vld [vmem:[#allocation2 + $0x1] sm:$0xff]
      %v369 = vld [vmem:[#allocation2 + $0x9] sm:$0xff]
      %v370 = vld [vmem:[#allocation2 + $0x19] sm:$0xff]
      %v371 = vld [vmem:[#allocation2 + $0x21] sm:$0xff]
      %v372 = vld [vmem:[#allocation2 + $0x31] sm:$0xff]
      %v373 = vld [vmem:[#allocation2 + $0x39] sm:$0xff]
      %v374 = vld [vmem:[#allocation2 + $0x49] sm:$0xff]
      %v375 = vld [vmem:[#allocation2 + $0x51] sm:$0xff]
      %v376 = vld [vmem:[#allocation2 + $0x61] sm:$0xff]
      %v377 = vld [vmem:[#allocation2 + $0x69] sm:$0xff]
      %v378 = vld [vmem:[#allocation2 + $0x79] sm:$0xff]
      %v379 = vld [vmem:[#allocation2 + $0x81] sm:$0xff]
      %v380 = vld [vmem:[#allocation2 + $0x91] sm:$0xff]
      %v381 = vld [vmem:[#allocation2 + $0x99] sm:$0xff]
      %v382 = vld [vmem:[#allocation2 + $0xa9] sm:$0xff]
      %v383 = vld [vmem:[#allocation2 + $0xb1] sm:$0xff]
      %v384 = vld [vmem:[#allocation2 + $0xc1] sm:$0xff]
      %v385 = vld [vmem:[#allocation2 + $0xc9] sm:$0xff]
      %v386 = vld [vmem:[#allocation2 + $0xd9] sm:$0xff]
      %v387 = vld [vmem:[#allocation2 + $0xe1] sm:$0xff]
      %v388 = vld [vmem:[#allocation2 + $0xf1] sm:$0xff]
      %v389 = vld [vmem:[#allocation2 + $0xf9] sm:$0xff]
      %v390 = vld [vmem:[#allocation2 + $0x109] sm:$0xff]
      %v391 = vld [vmem:[#allocation2 + $0x111] sm:$0xff]
      %v392 = vld [vmem:[#allocation2 + $0x121] sm:$0xff]
      %v393 = vld [vmem:[#allocation2 + $0x129] sm:$0xff]
      %v394 = vld [vmem:[#allocation2 + $0x139] sm:$0xff]
      %v395 = vld [vmem:[#allocation2 + $0x141] sm:$0xff]
      %v396 = vld [vmem:[#allocation2 + $0x151] sm:$0xff]
      %v397 = vld [vmem:[#allocation2 + $0x159] sm:$0xff]
      %v398 = vld [vmem:[#allocation2 + $0x169] sm:$0xff]
      %v399 = vld [vmem:[#allocation2 + $0x171] sm:$0xff]
      %v400 = vld [vmem:[%s183 + $0x1] sm:$0x1]
      %v401 = vlaneseq
      %v402 = vshrl.u32 %v401, 7
      %v403 = vsub.s32 0, %v402
      %v404 = vrot.slane %v400, %v403
      %v405 = vmul.f32 %v368, %v404
      %v406 = vmul.f32 %v369, %v404
      %v407 = vmul.f32 %v370, %v404
      %v408 = vmul.f32 %v371, %v404
      %v409 = vmul.f32 %v372, %v404
      %v410 = vmul.f32 %v373, %v404
      %v411 = vmul.f32 %v374, %v404
      %v412 = vmul.f32 %v375, %v404
      %v413 = vmul.f32 %v376, %v404
      %v414 = vmul.f32 %v377, %v404
      %v415 = vmul.f32 %v378, %v404
      %v416 = vmul.f32 %v379, %v404
      %v417 = vmul.f32 %v380, %v404
      %v418 = vmul.f32 %v381, %v404
      %v419 = vmul.f32 %v382, %v404
      %v420 = vmul.f32 %v383, %v404
      %v421 = vmul.f32 %v384, %v404
      %v422 = vmul.f32 %v385, %v404
      %v423 = vmul.f32 %v386, %v404
      %v424 = vmul.f32 %v387, %v404
      %v425 = vmul.f32 %v388, %v404
      %v426 = vmul.f32 %v389, %v404
      %v427 = vmul.f32 %v390, %v404
      %v428 = vmul.f32 %v391, %v404
      %v429 = vmul.f32 %v392, %v404
      %v430 = vmul.f32 %v393, %v404
      %v431 = vmul.f32 %v394, %v404
      %v432 = vmul.f32 %v395, %v404
      %v433 = vmul.f32 %v396, %v404
      %v434 = vmul.f32 %v397, %v404
      %v435 = vmul.f32 %v398, %v404
      %v436 = vmul.f32 %v399, %v404
      %v437 = vadd.f32 %v336, %v405
      %v438 = vadd.f32 %v337, %v406
      %v439 = vadd.f32 %v338, %v407
      %v440 = vadd.f32 %v339, %v408
      %v441 = vadd.f32 %v340, %v409
      %v442 = vadd.f32 %v341, %v410
      %v443 = vadd.f32 %v342, %v411
      %v444 = vadd.f32 %v343, %v412
      %v445 = vadd.f32 %v344, %v413
      %v446 = vadd.f32 %v345, %v414
      %v447 = vadd.f32 %v346, %v415
      %v448 = vadd.f32 %v347, %v416
      %v449 = vadd.f32 %v348, %v417
      %v450 = vadd.f32 %v349, %v418
      %v451 = vadd.f32 %v350, %v419
      %v452 = vadd.f32 %v351, %v420
      %v453 = vadd.f32 %v352, %v421
      %v454 = vadd.f32 %v353, %v422
      %v455 = vadd.f32 %v354, %v423
      %v456 = vadd.f32 %v355, %v424
      %v457 = vadd.f32 %v356, %v425
      %v458 = vadd.f32 %v357, %v426
      %v459 = vadd.f32 %v358, %v427
      %v460 = vadd.f32 %v359, %v428
      %v461 = vadd.f32 %v360, %v429
      %v462 = vadd.f32 %v361, %v430
      %v463 = vadd.f32 %v362, %v431
      %v464 = vadd.f32 %v363, %v432
      %v465 = vadd.f32 %v364, %v433
      %v466 = vadd.f32 %v365, %v434
      %v467 = vadd.f32 %v366, %v435
      %v468 = vadd.f32 %v367, %v436
      %v469 = vld [vmem:[#allocation2 + $0x2] sm:$0xff]
      %v470 = vld [vmem:[#allocation2 + $0xa] sm:$0xff]
      %v471 = vld [vmem:[#allocation2 + $0x1a] sm:$0xff]
      %v472 = vld [vmem:[#allocation2 + $0x22] sm:$0xff]
      %v473 = vld [vmem:[#allocation2 + $0x32] sm:$0xff]
      %v474 = vld [vmem:[#allocation2 + $0x3a] sm:$0xff]
      %v475 = vld [vmem:[#allocation2 + $0x4a] sm:$0xff]
      %v476 = vld [vmem:[#allocation2 + $0x52] sm:$0xff]
      %v477 = vld [vmem:[#allocation2 + $0x62] sm:$0xff]
      %v478 = vld [vmem:[#allocation2 + $0x6a] sm:$0xff]
      %v479 = vld [vmem:[#allocation2 + $0x7a] sm:$0xff]
      %v480 = vld [vmem:[#allocation2 + $0x82] sm:$0xff]
      %v481 = vld [vmem:[#allocation2 + $0x92] sm:$0xff]
      %v482 = vld [vmem:[#allocation2 + $0x9a] sm:$0xff]
      %v483 = vld [vmem:[#allocation2 + $0xaa] sm:$0xff]
      %v484 = vld [vmem:[#allocation2 + $0xb2] sm:$0xff]
      %v485 = vld [vmem:[#allocation2 + $0xc2] sm:$0xff]
      %v486 = vld [vmem:[#allocation2 + $0xca] sm:$0xff]
      %v487 = vld [vmem:[#allocation2 + $0xda] sm:$0xff]
      %v488 = vld [vmem:[#allocation2 + $0xe2] sm:$0xff]
      %v489 = vld [vmem:[#allocation2 + $0xf2] sm:$0xff]
      %v490 = vld [vmem:[#allocation2 + $0xfa] sm:$0xff]
      %v491 = vld [vmem:[#allocation2 + $0x10a] sm:$0xff]
      %v492 = vld [vmem:[#allocation2 + $0x112] sm:$0xff]
      %v493 = vld [vmem:[#allocation2 + $0x122] sm:$0xff]
      %v494 = vld [vmem:[#allocation2 + $0x12a] sm:$0xff]
      %v495 = vld [vmem:[#allocation2 + $0x13a] sm:$0xff]
      %v496 = vld [vmem:[#allocation2 + $0x142] sm:$0xff]
      %v497 = vld [vmem:[#allocation2 + $0x152] sm:$0xff]
      %v498 = vld [vmem:[#allocation2 + $0x15a] sm:$0xff]
      %v499 = vld [vmem:[#allocation2 + $0x16a] sm:$0xff]
      %v500 = vld [vmem:[#allocation2 + $0x172] sm:$0xff]
      %v501 = vld [vmem:[%s183 + $0x2] sm:$0x1]
      %v502 = vlaneseq
      %v503 = vshrl.u32 %v502, 7
      %v504 = vsub.s32 0, %v503
      %v505 = vrot.slane %v501, %v504
      %v506 = vmul.f32 %v469, %v505
      %v507 = vmul.f32 %v470, %v505
      %v508 = vmul.f32 %v471, %v505
      %v509 = vmul.f32 %v472, %v505
      %v510 = vmul.f32 %v473, %v505
      %v511 = vmul.f32 %v474, %v505
      %v512 = vmul.f32 %v475, %v505
      %v513 = vmul.f32 %v476, %v505
      %v514 = vmul.f32 %v477, %v505
      %v515 = vmul.f32 %v478, %v505
      %v516 = vmul.f32 %v479, %v505
      %v517 = vmul.f32 %v480, %v505
      %v518 = vmul.f32 %v481, %v505
      %v519 = vmul.f32 %v482, %v505
      %v520 = vmul.f32 %v483, %v505
      %v521 = vmul.f32 %v484, %v505
      %v522 = vmul.f32 %v485, %v505
      %v523 = vmul.f32 %v486, %v505
      %v524 = vmul.f32 %v487, %v505
      %v525 = vmul.f32 %v488, %v505
      %v526 = vmul.f32 %v489, %v505
      %v527 = vmul.f32 %v490, %v505
      %v528 = vmul.f32 %v491, %v505
      %v529 = vmul.f32 %v492, %v505
      %v530 = vmul.f32 %v493, %v505
      %v531 = vmul.f32 %v494, %v505
      %v532 = vmul.f32 %v495, %v505
      %v533 = vmul.f32 %v496, %v505
      %v534 = vmul.f32 %v497, %v505
      %v535 = vmul.f32 %v498, %v505
      %v536 = vmul.f32 %v499, %v505
      %v537 = vmul.f32 %v500, %v505
      %v538 = vadd.f32 %v437, %v506
      %v539 = vadd.f32 %v438, %v507
      %v540 = vadd.f32 %v439, %v508
      %v541 = vadd.f32 %v440, %v509
      %v542 = vadd.f32 %v441, %v510
      %v543 = vadd.f32 %v442, %v511
      %v544 = vadd.f32 %v443, %v512
      %v545 = vadd.f32 %v444, %v513
      %v546 = vadd.f32 %v445, %v514
      %v547 = vadd.f32 %v446, %v515
      %v548 = vadd.f32 %v447, %v516
      %v549 = vadd.f32 %v448, %v517
      %v550 = vadd.f32 %v449, %v518
      %v551 = vadd.f32 %v450, %v519
      %v552 = vadd.f32 %v451, %v520
      %v553 = vadd.f32 %v452, %v521
      %v554 = vadd.f32 %v453, %v522
      %v555 = vadd.f32 %v454, %v523
      %v556 = vadd.f32 %v455, %v524
      %v557 = vadd.f32 %v456, %v525
      %v558 = vadd.f32 %v457, %v526
      %v559 = vadd.f32 %v458, %v527
      %v560 = vadd.f32 %v459, %v528
      %v561 = vadd.f32 %v460, %v529
      %v562 = vadd.f32 %v461, %v530
      %v563 = vadd.f32 %v462, %v531
      %v564 = vadd.f32 %v463, %v532
      %v565 = vadd.f32 %v464, %v533
      %v566 = vadd.f32 %v465, %v534
      %v567 = vadd.f32 %v466, %v535
      %v568 = vadd.f32 %v467, %v536
      %v569 = vadd.f32 %v468, %v537
      %v570 = vld [vmem:[%s233] sm:$0xff]
      %v571 = vld [vmem:[%s233 + $0x8] sm:$0xff]
      %v572 = vld [vmem:[%s233 + $0x18] sm:$0xff]
      %v573 = vld [vmem:[%s233 + $0x20] sm:$0xff]
      %v574 = vld [vmem:[%s233 + $0x30] sm:$0xff]
      %v575 = vld [vmem:[%s233 + $0x38] sm:$0xff]
      %v576 = vld [vmem:[%s233 + $0x48] sm:$0xff]
      %v577 = vld [vmem:[%s233 + $0x50] sm:$0xff]
      %v578 = vld [vmem:[%s233 + $0x60] sm:$0xff]
      %v579 = vld [vmem:[%s233 + $0x68] sm:$0xff]
      %v580 = vld [vmem:[%s233 + $0x78] sm:$0xff]
      %v581 = vld [vmem:[%s233 + $0x80] sm:$0xff]
      %v582 = vld [vmem:[%s233 + $0x90] sm:$0xff]
      %v583 = vld [vmem:[%s233 + $0x98] sm:$0xff]
      %v584 = vld [vmem:[%s233 + $0xa8] sm:$0xff]
      %v585 = vld [vmem:[%s233 + $0xb0] sm:$0xff]
      %v586 = vld [vmem:[%s233 + $0xc0] sm:$0xff]
      %v587 = vld [vmem:[%s233 + $0xc8] sm:$0xff]
      %v588 = vld [vmem:[%s233 + $0xd8] sm:$0xff]
      %v589 = vld [vmem:[%s233 + $0xe0] sm:$0xff]
      %v590 = vld [vmem:[%s233 + $0xf0] sm:$0xff]
      %v591 = vld [vmem:[%s233 + $0xf8] sm:$0xff]
      %v592 = vld [vmem:[%s233 + $0x108] sm:$0xff]
      %v593 = vld [vmem:[%s233 + $0x110] sm:$0xff]
      %v594 = vld [vmem:[%s233 + $0x120] sm:$0xff]
      %v595 = vld [vmem:[%s233 + $0x128] sm:$0xff]
      %v596 = vld [vmem:[%s233 + $0x138] sm:$0xff]
      %v597 = vld [vmem:[%s233 + $0x140] sm:$0xff]
      %v598 = vld [vmem:[%s233 + $0x150] sm:$0xff]
      %v599 = vld [vmem:[%s233 + $0x158] sm:$0xff]
      %v600 = vld [vmem:[%s233 + $0x168] sm:$0xff]
      %v601 = vld [vmem:[%s233 + $0x170] sm:$0xff]
      %v602 = vld [vmem:[%s183 + $0x3] sm:$0x1]
      %v603 = vlaneseq
      %v604 = vshrl.u32 %v603, 7
      %v605 = vsub.s32 0, %v604
      %v606 = vrot.slane %v602, %v605
      %v607 = vmul.f32 %v570, %v606
      %v608 = vmul.f32 %v571, %v606
      %v609 = vmul.f32 %v572, %v606
      %v610 = vmul.f32 %v573, %v606
      %v611 = vmul.f32 %v574, %v606
      %v612 = vmul.f32 %v575, %v606
      %v613 = vmul.f32 %v576, %v606
      %v614 = vmul.f32 %v577, %v606
      %v615 = vmul.f32 %v578, %v606
      %v616 = vmul.f32 %v579, %v606
      %v617 = vmul.f32 %v580, %v606
      %v618 = vmul.f32 %v581, %v606
      %v619 = vmul.f32 %v582, %v606
      %v620 = vmul.f32 %v583, %v606
      %v621 = vmul.f32 %v584, %v606
      %v622 = vmul.f32 %v585, %v606
      %v623 = vmul.f32 %v586, %v606
      %v624 = vmul.f32 %v587, %v606
      %v625 = vmul.f32 %v588, %v606
      %v626 = vmul.f32 %v589, %v606
      %v627 = vmul.f32 %v590, %v606
      %v628 = vmul.f32 %v591, %v606
      %v629 = vmul.f32 %v592, %v606
      %v630 = vmul.f32 %v593, %v606
      %v631 = vmul.f32 %v594, %v606
      %v632 = vmul.f32 %v595, %v606
      %v633 = vmul.f32 %v596, %v606
      %v634 = vmul.f32 %v597, %v606
      %v635 = vmul.f32 %v598, %v606
      %v636 = vmul.f32 %v599, %v606
      %v637 = vmul.f32 %v600, %v606
      %v638 = vmul.f32 %v601, %v606
      %v639 = vadd.f32 %v538, %v607
      %v640 = vadd.f32 %v539, %v608
      %v641 = vadd.f32 %v540, %v609
      %v642 = vadd.f32 %v541, %v610
      %v643 = vadd.f32 %v542, %v611
      %v644 = vadd.f32 %v543, %v612
      %v645 = vadd.f32 %v544, %v613
      %v646 = vadd.f32 %v545, %v614
      %v647 = vadd.f32 %v546, %v615
      %v648 = vadd.f32 %v547, %v616
      %v649 = vadd.f32 %v548, %v617
      %v650 = vadd.f32 %v549, %v618
      %v651 = vadd.f32 %v550, %v619
      %v652 = vadd.f32 %v551, %v620
      %v653 = vadd.f32 %v552, %v621
      %v654 = vadd.f32 %v553, %v622
      %v655 = vadd.f32 %v554, %v623
      %v656 = vadd.f32 %v555, %v624
      %v657 = vadd.f32 %v556, %v625
      %v658 = vadd.f32 %v557, %v626
      %v659 = vadd.f32 %v558, %v627
      %v660 = vadd.f32 %v559, %v628
      %v661 = vadd.f32 %v560, %v629
      %v662 = vadd.f32 %v561, %v630
      %v663 = vadd.f32 %v562, %v631
      %v664 = vadd.f32 %v563, %v632
      %v665 = vadd.f32 %v564, %v633
      %v666 = vadd.f32 %v565, %v634
      %v667 = vadd.f32 %v566, %v635
      %v668 = vadd.f32 %v567, %v636
      %v669 = vadd.f32 %v568, %v637
      %v670 = vadd.f32 %v569, %v638
      %v671 = vld [vmem:[%s233 + $0x1] sm:$0xff]
      %v672 = vld [vmem:[%s233 + $0x9] sm:$0xff]
      %v673 = vld [vmem:[%s233 + $0x19] sm:$0xff]
      %v674 = vld [vmem:[%s233 + $0x21] sm:$0xff]
      %v675 = vld [vmem:[%s233 + $0x31] sm:$0xff]
      %v676 = vld [vmem:[%s233 + $0x39] sm:$0xff]
      %v677 = vld [vmem:[%s233 + $0x49] sm:$0xff]
      %v678 = vld [vmem:[%s233 + $0x51] sm:$0xff]
      %v679 = vld [vmem:[%s233 + $0x61] sm:$0xff]
      %v680 = vld [vmem:[%s233 + $0x69] sm:$0xff]
      %v681 = vld [vmem:[%s233 + $0x79] sm:$0xff]
      %v682 = vld [vmem:[%s233 + $0x81] sm:$0xff]
      %v683 = vld [vmem:[%s233 + $0x91] sm:$0xff]
      %v684 = vld [vmem:[%s233 + $0x99] sm:$0xff]
      %v685 = vld [vmem:[%s233 + $0xa9] sm:$0xff]
      %v686 = vld [vmem:[%s233 + $0xb1] sm:$0xff]
      %v687 = vld [vmem:[%s233 + $0xc1] sm:$0xff]
      %v688 = vld [vmem:[%s233 + $0xc9] sm:$0xff]
      %v689 = vld [vmem:[%s233 + $0xd9] sm:$0xff]
      %v690 = vld [vmem:[%s233 + $0xe1] sm:$0xff]
      %v691 = vld [vmem:[%s233 + $0xf1] sm:$0xff]
      %v692 = vld [vmem:[%s233 + $0xf9] sm:$0xff]
      %v693 = vld [vmem:[%s233 + $0x109] sm:$0xff]
      %v694 = vld [vmem:[%s233 + $0x111] sm:$0xff]
      %v695 = vld [vmem:[%s233 + $0x121] sm:$0xff]
      %v696 = vld [vmem:[%s233 + $0x129] sm:$0xff]
      %v697 = vld [vmem:[%s233 + $0x139] sm:$0xff]
      %v698 = vld [vmem:[%s233 + $0x141] sm:$0xff]
      %v699 = vld [vmem:[%s233 + $0x151] sm:$0xff]
      %v700 = vld [vmem:[%s233 + $0x159] sm:$0xff]
      %v701 = vld [vmem:[%s233 + $0x169] sm:$0xff]
      %v702 = vld [vmem:[%s233 + $0x171] sm:$0xff]
      %v703 = vld [vmem:[%s183 + $0x4] sm:$0x1]
      %v704 = vlaneseq
      %v705 = vshrl.u32 %v704, 7
      %v706 = vsub.s32 0, %v705
      %v707 = vrot.slane %v703, %v706
      %v708 = vmul.f32 %v671, %v707
      %v709 = vmul.f32 %v672, %v707
      %v710 = vmul.f32 %v673, %v707
      %v711 = vmul.f32 %v674, %v707
      %v712 = vmul.f32 %v675, %v707
      %v713 = vmul.f32 %v676, %v707
      %v714 = vmul.f32 %v677, %v707
      %v715 = vmul.f32 %v678, %v707
      %v716 = vmul.f32 %v679, %v707
      %v717 = vmul.f32 %v680, %v707
      %v718 = vmul.f32 %v681, %v707
      %v719 = vmul.f32 %v682, %v707
      %v720 = vmul.f32 %v683, %v707
      %v721 = vmul.f32 %v684, %v707
      %v722 = vmul.f32 %v685, %v707
      %v723 = vmul.f32 %v686, %v707
      %v724 = vmul.f32 %v687, %v707
      %v725 = vmul.f32 %v688, %v707
      %v726 = vmul.f32 %v689, %v707
      %v727 = vmul.f32 %v690, %v707
      %v728 = vmul.f32 %v691, %v707
      %v729 = vmul.f32 %v692, %v707
      %v730 = vmul.f32 %v693, %v707
      %v731 = vmul.f32 %v694, %v707
      %v732 = vmul.f32 %v695, %v707
      %v733 = vmul.f32 %v696, %v707
      %v734 = vmul.f32 %v697, %v707
      %v735 = vmul.f32 %v698, %v707
      %v736 = vmul.f32 %v699, %v707
      %v737 = vmul.f32 %v700, %v707
      %v738 = vmul.f32 %v701, %v707
      %v739 = vmul.f32 %v702, %v707
      %v740 = vadd.f32 %v639, %v708
      %v741 = vadd.f32 %v640, %v709
      %v742 = vadd.f32 %v641, %v710
      %v743 = vadd.f32 %v642, %v711
      %v744 = vadd.f32 %v643, %v712
      %v745 = vadd.f32 %v644, %v713
      %v746 = vadd.f32 %v645, %v714
      %v747 = vadd.f32 %v646, %v715
      %v748 = vadd.f32 %v647, %v716
      %v749 = vadd.f32 %v648, %v717
      %v750 = vadd.f32 %v649, %v718
      %v751 = vadd.f32 %v650, %v719
      %v752 = vadd.f32 %v651, %v720
      %v753 = vadd.f32 %v652, %v721
      %v754 = vadd.f32 %v653, %v722
      %v755 = vadd.f32 %v654, %v723
      %v756 = vadd.f32 %v655, %v724
      %v757 = vadd.f32 %v656, %v725
      %v758 = vadd.f32 %v657, %v726
      %v759 = vadd.f32 %v658, %v727
      %v760 = vadd.f32 %v659, %v728
      %v761 = vadd.f32 %v660, %v729
      %v762 = vadd.f32 %v661, %v730
      %v763 = vadd.f32 %v662, %v731
      %v764 = vadd.f32 %v663, %v732
      %v765 = vadd.f32 %v664, %v733
      %v766 = vadd.f32 %v665, %v734
      %v767 = vadd.f32 %v666, %v735
      %v768 = vadd.f32 %v667, %v736
      %v769 = vadd.f32 %v668, %v737
      %v770 = vadd.f32 %v669, %v738
      %v771 = vadd.f32 %v670, %v739
      %v772 = vld [vmem:[%s233 + $0x2] sm:$0xff]
      %v773 = vld [vmem:[%s233 + $0xa] sm:$0xff]
      %v774 = vld [vmem:[%s233 + $0x1a] sm:$0xff]
      %v775 = vld [vmem:[%s233 + $0x22] sm:$0xff]
      %v776 = vld [vmem:[%s233 + $0x32] sm:$0xff]
      %v777 = vld [vmem:[%s233 + $0x3a] sm:$0xff]
      %v778 = vld [vmem:[%s233 + $0x4a] sm:$0xff]
      %v779 = vld [vmem:[%s233 + $0x52] sm:$0xff]
      %v780 = vld [vmem:[%s233 + $0x62] sm:$0xff]
      %v781 = vld [vmem:[%s233 + $0x6a] sm:$0xff]
      %v782 = vld [vmem:[%s233 + $0x7a] sm:$0xff]
      %v783 = vld [vmem:[%s233 + $0x82] sm:$0xff]
      %v784 = vld [vmem:[%s233 + $0x92] sm:$0xff]
      %v785 = vld [vmem:[%s233 + $0x9a] sm:$0xff]
      %v786 = vld [vmem:[%s233 + $0xaa] sm:$0xff]
      %v787 = vld [vmem:[%s233 + $0xb2] sm:$0xff]
      %v788 = vld [vmem:[%s233 + $0xc2] sm:$0xff]
      %v789 = vld [vmem:[%s233 + $0xca] sm:$0xff]
      %v790 = vld [vmem:[%s233 + $0xda] sm:$0xff]
      %v791 = vld [vmem:[%s233 + $0xe2] sm:$0xff]
      %v792 = vld [vmem:[%s233 + $0xf2] sm:$0xff]
      %v793 = vld [vmem:[%s233 + $0xfa] sm:$0xff]
      %v794 = vld [vmem:[%s233 + $0x10a] sm:$0xff]
      %v795 = vld [vmem:[%s233 + $0x112] sm:$0xff]
      %v796 = vld [vmem:[%s233 + $0x122] sm:$0xff]
      %v797 = vld [vmem:[%s233 + $0x12a] sm:$0xff]
      %v798 = vld [vmem:[%s233 + $0x13a] sm:$0xff]
      %v799 = vld [vmem:[%s233 + $0x142] sm:$0xff]
      %v800 = vld [vmem:[%s233 + $0x152] sm:$0xff]
      %v801 = vld [vmem:[%s233 + $0x15a] sm:$0xff]
      %v802 = vld [vmem:[%s233 + $0x16a] sm:$0xff]
      %v803 = vld [vmem:[%s233 + $0x172] sm:$0xff]
      %v804 = vld [vmem:[%s183 + $0x5] sm:$0x1]
      %v805 = vlaneseq
      %v806 = vshrl.u32 %v805, 7
      %v807 = vsub.s32 0, %v806
      %v808 = vrot.slane %v804, %v807
      %v809 = vmul.f32 %v772, %v808
      %v810 = vmul.f32 %v773, %v808
      %v811 = vmul.f32 %v774, %v808
      %v812 = vmul.f32 %v775, %v808
      %v813 = vmul.f32 %v776, %v808
      %v814 = vmul.f32 %v777, %v808
      %v815 = vmul.f32 %v778, %v808
      %v816 = vmul.f32 %v779, %v808
      %v817 = vmul.f32 %v780, %v808
      %v818 = vmul.f32 %v781, %v808
      %v819 = vmul.f32 %v782, %v808
      %v820 = vmul.f32 %v783, %v808
      %v821 = vmul.f32 %v784, %v808
      %v822 = vmul.f32 %v785, %v808
      %v823 = vmul.f32 %v786, %v808
      %v824 = vmul.f32 %v787, %v808
      %v825 = vmul.f32 %v788, %v808
      %v826 = vmul.f32 %v789, %v808
      %v827 = vmul.f32 %v790, %v808
      %v828 = vmul.f32 %v791, %v808
      %v829 = vmul.f32 %v792, %v808
      %v830 = vmul.f32 %v793, %v808
      %v831 = vmul.f32 %v794, %v808
      %v832 = vmul.f32 %v795, %v808
      %v833 = vmul.f32 %v796, %v808
      %v834 = vmul.f32 %v797, %v808
      %v835 = vmul.f32 %v798, %v808
      %v836 = vmul.f32 %v799, %v808
      %v837 = vmul.f32 %v800, %v808
      %v838 = vmul.f32 %v801, %v808
      %v839 = vmul.f32 %v802, %v808
      %v840 = vmul.f32 %v803, %v808
      %v841 = vadd.f32 %v740, %v809
      %v842 = vadd.f32 %v741, %v810
      %v843 = vadd.f32 %v742, %v811
      %v844 = vadd.f32 %v743, %v812
      %v845 = vadd.f32 %v744, %v813
      %v846 = vadd.f32 %v745, %v814
      %v847 = vadd.f32 %v746, %v815
      %v848 = vadd.f32 %v747, %v816
      %v849 = vadd.f32 %v748, %v817
      %v850 = vadd.f32 %v749, %v818
      %v851 = vadd.f32 %v750, %v819
      %v852 = vadd.f32 %v751, %v820
      %v853 = vadd.f32 %v752, %v821
      %v854 = vadd.f32 %v753, %v822
      %v855 = vadd.f32 %v754, %v823
      %v856 = vadd.f32 %v755, %v824
      %v857 = vadd.f32 %v756, %v825
      %v858 = vadd.f32 %v757, %v826
      %v859 = vadd.f32 %v758, %v827
      %v860 = vadd.f32 %v759, %v828
      %v861 = vadd.f32 %v760, %v829
      %v862 = vadd.f32 %v761, %v830
      %v863 = vadd.f32 %v762, %v831
      %v864 = vadd.f32 %v763, %v832
      %v865 = vadd.f32 %v764, %v833
      %v866 = vadd.f32 %v765, %v834
      %v867 = vadd.f32 %v766, %v835
      %v868 = vadd.f32 %v767, %v836
      %v869 = vadd.f32 %v768, %v837
      %v870 = vadd.f32 %v769, %v838
      %v871 = vadd.f32 %v770, %v839
      %v872 = vadd.f32 %v771, %v840
      %s873 = scalar_lea.vmem [#allocation2], 48
      %v874 = vld [vmem:[%s873] sm:$0xff]
      %v875 = vld [vmem:[%s873 + $0x8] sm:$0xff]
      %v876 = vld [vmem:[%s873 + $0x18] sm:$0xff]
      %v877 = vld [vmem:[%s873 + $0x20] sm:$0xff]
      %v878 = vld [vmem:[%s873 + $0x30] sm:$0xff]
      %v879 = vld [vmem:[%s873 + $0x38] sm:$0xff]
      %v880 = vld [vmem:[%s873 + $0x48] sm:$0xff]
      %v881 = vld [vmem:[%s873 + $0x50] sm:$0xff]
      %v882 = vld [vmem:[%s873 + $0x60] sm:$0xff]
      %v883 = vld [vmem:[%s873 + $0x68] sm:$0xff]
      %v884 = vld [vmem:[%s873 + $0x78] sm:$0xff]
      %v885 = vld [vmem:[%s873 + $0x80] sm:$0xff]
      %v886 = vld [vmem:[%s873 + $0x90] sm:$0xff]
      %v887 = vld [vmem:[%s873 + $0x98] sm:$0xff]
      %v888 = vld [vmem:[%s873 + $0xa8] sm:$0xff]
      %v889 = vld [vmem:[%s873 + $0xb0] sm:$0xff]
      %v890 = vld [vmem:[%s873 + $0xc0] sm:$0xff]
      %v891 = vld [vmem:[%s873 + $0xc8] sm:$0xff]
      %v892 = vld [vmem:[%s873 + $0xd8] sm:$0xff]
      %v893 = vld [vmem:[%s873 + $0xe0] sm:$0xff]
      %v894 = vld [vmem:[%s873 + $0xf0] sm:$0xff]
      %v895 = vld [vmem:[%s873 + $0xf8] sm:$0xff]
      %v896 = vld [vmem:[%s873 + $0x108] sm:$0xff]
      %v897 = vld [vmem:[%s873 + $0x110] sm:$0xff]
      %v898 = vld [vmem:[%s873 + $0x120] sm:$0xff]
      %v899 = vld [vmem:[%s873 + $0x128] sm:$0xff]
      %v900 = vld [vmem:[%s873 + $0x138] sm:$0xff]
      %v901 = vld [vmem:[%s873 + $0x140] sm:$0xff]
      %v902 = vld [vmem:[%s873 + $0x150] sm:$0xff]
      %v903 = vld [vmem:[%s873 + $0x158] sm:$0xff]
      %v904 = vld [vmem:[%s873 + $0x168] sm:$0xff]
      %v905 = vld [vmem:[%s873 + $0x170] sm:$0xff]
      %v906 = vld [vmem:[%s183 + $0x6] sm:$0x1]
      %v907 = vlaneseq
      %v908 = vshrl.u32 %v907, 7
      %v909 = vsub.s32 0, %v908
      %v910 = vrot.slane %v906, %v909
      %v911 = vmul.f32 %v874, %v910
      %v912 = vmul.f32 %v875, %v910
      %v913 = vmul.f32 %v876, %v910
      %v914 = vmul.f32 %v877, %v910
      %v915 = vmul.f32 %v878, %v910
      %v916 = vmul.f32 %v879, %v910
      %v917 = vmul.f32 %v880, %v910
      %v918 = vmul.f32 %v881, %v910
      %v919 = vmul.f32 %v882, %v910
      %v920 = vmul.f32 %v883, %v910
      %v921 = vmul.f32 %v884, %v910
      %v922 = vmul.f32 %v885, %v910
      %v923 = vmul.f32 %v886, %v910
      %v924 = vmul.f32 %v887, %v910
      %v925 = vmul.f32 %v888, %v910
      %v926 = vmul.f32 %v889, %v910
      %v927 = vmul.f32 %v890, %v910
      %v928 = vmul.f32 %v891, %v910
      %v929 = vmul.f32 %v892, %v910
      %v930 = vmul.f32 %v893, %v910
      %v931 = vmul.f32 %v894, %v910
      %v932 = vmul.f32 %v895, %v910
      %v933 = vmul.f32 %v896, %v910
      %v934 = vmul.f32 %v897, %v910
      %v935 = vmul.f32 %v898, %v910
      %v936 = vmul.f32 %v899, %v910
      %v937 = vmul.f32 %v900, %v910
      %v938 = vmul.f32 %v901, %v910
      %v939 = vmul.f32 %v902, %v910
      %v940 = vmul.f32 %v903, %v910
      %v941 = vmul.f32 %v904, %v910
      %v942 = vmul.f32 %v905, %v910
      %v943 = vadd.f32 %v841, %v911
      %v944 = vadd.f32 %v842, %v912
      %v945 = vadd.f32 %v843, %v913
      %v946 = vadd.f32 %v844, %v914
      %v947 = vadd.f32 %v845, %v915
      %v948 = vadd.f32 %v846, %v916
      %v949 = vadd.f32 %v847, %v917
      %v950 = vadd.f32 %v848, %v918
      %v951 = vadd.f32 %v849, %v919
      %v952 = vadd.f32 %v850, %v920
      %v953 = vadd.f32 %v851, %v921
      %v954 = vadd.f32 %v852, %v922
      %v955 = vadd.f32 %v853, %v923
      %v956 = vadd.f32 %v854, %v924
      %v957 = vadd.f32 %v855, %v925
      %v958 = vadd.f32 %v856, %v926
      %v959 = vadd.f32 %v857, %v927
      %v960 = vadd.f32 %v858, %v928
      %v961 = vadd.f32 %v859, %v929
      %v962 = vadd.f32 %v860, %v930
      %v963 = vadd.f32 %v861, %v931
      %v964 = vadd.f32 %v862, %v932
      %v965 = vadd.f32 %v863, %v933
      %v966 = vadd.f32 %v864, %v934
      %v967 = vadd.f32 %v865, %v935
      %v968 = vadd.f32 %v866, %v936
      %v969 = vadd.f32 %v867, %v937
      %v970 = vadd.f32 %v868, %v938
      %v971 = vadd.f32 %v869, %v939
      %v972 = vadd.f32 %v870, %v940
      %v973 = vadd.f32 %v871, %v941
      %v974 = vadd.f32 %v872, %v942
      %v975 = vld [vmem:[%s873 + $0x1] sm:$0xff]
      %v976 = vld [vmem:[%s873 + $0x9] sm:$0xff]
      %v977 = vld [vmem:[%s873 + $0x19] sm:$0xff]
      %v978 = vld [vmem:[%s873 + $0x21] sm:$0xff]
      %v979 = vld [vmem:[%s873 + $0x31] sm:$0xff]
      %v980 = vld [vmem:[%s873 + $0x39] sm:$0xff]
      %v981 = vld [vmem:[%s873 + $0x49] sm:$0xff]
      %v982 = vld [vmem:[%s873 + $0x51] sm:$0xff]
      %v983 = vld [vmem:[%s873 + $0x61] sm:$0xff]
      %v984 = vld [vmem:[%s873 + $0x69] sm:$0xff]
      %v985 = vld [vmem:[%s873 + $0x79] sm:$0xff]
      %v986 = vld [vmem:[%s873 + $0x81] sm:$0xff]
      %v987 = vld [vmem:[%s873 + $0x91] sm:$0xff]
      %v988 = vld [vmem:[%s873 + $0x99] sm:$0xff]
      %v989 = vld [vmem:[%s873 + $0xa9] sm:$0xff]
      %v990 = vld [vmem:[%s873 + $0xb1] sm:$0xff]
      %v991 = vld [vmem:[%s873 + $0xc1] sm:$0xff]
      %v992 = vld [vmem:[%s873 + $0xc9] sm:$0xff]
      %v993 = vld [vmem:[%s873 + $0xd9] sm:$0xff]
      %v994 = vld [vmem:[%s873 + $0xe1] sm:$0xff]
      %v995 = vld [vmem:[%s873 + $0xf1] sm:$0xff]
      %v996 = vld [vmem:[%s873 + $0xf9] sm:$0xff]
      %v997 = vld [vmem:[%s873 + $0x109] sm:$0xff]
      %v998 = vld [vmem:[%s873 + $0x111] sm:$0xff]
      %v999 = vld [vmem:[%s873 + $0x121] sm:$0xff]
      %v1000 = vld [vmem:[%s873 + $0x129] sm:$0xff]
      %v1001 = vld [vmem:[%s873 + $0x139] sm:$0xff]
      %v1002 = vld [vmem:[%s873 + $0x141] sm:$0xff]
      %v1003 = vld [vmem:[%s873 + $0x151] sm:$0xff]
      %v1004 = vld [vmem:[%s873 + $0x159] sm:$0xff]
      %v1005 = vld [vmem:[%s873 + $0x169] sm:$0xff]
      %v1006 = vld [vmem:[%s873 + $0x171] sm:$0xff]
      %v1007 = vld [vmem:[%s183 + $0x7] sm:$0x1]
      %v1008 = vlaneseq
      %v1009 = vshrl.u32 %v1008, 7
      %v1010 = vsub.s32 0, %v1009
      %v1011 = vrot.slane %v1007, %v1010
      %v1012 = vmul.f32 %v975, %v1011
      %v1013 = vmul.f32 %v976, %v1011
      %v1014 = vmul.f32 %v977, %v1011
      %v1015 = vmul.f32 %v978, %v1011
      %v1016 = vmul.f32 %v979, %v1011
      %v1017 = vmul.f32 %v980, %v1011
      %v1018 = vmul.f32 %v981, %v1011
      %v1019 = vmul.f32 %v982, %v1011
      %v1020 = vmul.f32 %v983, %v1011
      %v1021 = vmul.f32 %v984, %v1011
      %v1022 = vmul.f32 %v985, %v1011
      %v1023 = vmul.f32 %v986, %v1011
      %v1024 = vmul.f32 %v987, %v1011
      %v1025 = vmul.f32 %v988, %v1011
      %v1026 = vmul.f32 %v989, %v1011
      %v1027 = vmul.f32 %v990, %v1011
      %v1028 = vmul.f32 %v991, %v1011
      %v1029 = vmul.f32 %v992, %v1011
      %v1030 = vmul.f32 %v993, %v1011
      %v1031 = vmul.f32 %v994, %v1011
      %v1032 = vmul.f32 %v995, %v1011
      %v1033 = vmul.f32 %v996, %v1011
      %v1034 = vmul.f32 %v997, %v1011
      %v1035 = vmul.f32 %v998, %v1011
      %v1036 = vmul.f32 %v999, %v1011
      %v1037 = vmul.f32 %v1000, %v1011
      %v1038 = vmul.f32 %v1001, %v1011
      %v1039 = vmul.f32 %v1002, %v1011
      %v1040 = vmul.f32 %v1003, %v1011
      %v1041 = vmul.f32 %v1004, %v1011
      %v1042 = vmul.f32 %v1005, %v1011
      %v1043 = vmul.f32 %v1006, %v1011
      %v1044 = vadd.f32 %v943, %v1012
      %v1045 = vadd.f32 %v944, %v1013
      %v1046 = vadd.f32 %v945, %v1014
      %v1047 = vadd.f32 %v946, %v1015
      %v1048 = vadd.f32 %v947, %v1016
      %v1049 = vadd.f32 %v948, %v1017
      %v1050 = vadd.f32 %v949, %v1018
      %v1051 = vadd.f32 %v950, %v1019
      %v1052 = vadd.f32 %v951, %v1020
      %v1053 = vadd.f32 %v952, %v1021
      %v1054 = vadd.f32 %v953, %v1022
      %v1055 = vadd.f32 %v954, %v1023
      %v1056 = vadd.f32 %v955, %v1024
      %v1057 = vadd.f32 %v956, %v1025
      %v1058 = vadd.f32 %v957, %v1026
      %v1059 = vadd.f32 %v958, %v1027
      %v1060 = vadd.f32 %v959, %v1028
      %v1061 = vadd.f32 %v960, %v1029
      %v1062 = vadd.f32 %v961, %v1030
      %v1063 = vadd.f32 %v962, %v1031
      %v1064 = vadd.f32 %v963, %v1032
      %v1065 = vadd.f32 %v964, %v1033
      %v1066 = vadd.f32 %v965, %v1034
      %v1067 = vadd.f32 %v966, %v1035
      %v1068 = vadd.f32 %v967, %v1036
      %v1069 = vadd.f32 %v968, %v1037
      %v1070 = vadd.f32 %v969, %v1038
      %v1071 = vadd.f32 %v970, %v1039
      %v1072 = vadd.f32 %v971, %v1040
      %v1073 = vadd.f32 %v972, %v1041
      %v1074 = vadd.f32 %v973, %v1042
      %v1075 = vadd.f32 %v974, %v1043
      %v1076 = vld [vmem:[%s873 + $0x2] sm:$0xff]
      %v1077 = vld [vmem:[%s873 + $0xa] sm:$0xff]
      %v1078 = vld [vmem:[%s873 + $0x1a] sm:$0xff]
      %v1079 = vld [vmem:[%s873 + $0x22] sm:$0xff]
      %v1080 = vld [vmem:[%s873 + $0x32] sm:$0xff]
      %v1081 = vld [vmem:[%s873 + $0x3a] sm:$0xff]
      %v1082 = vld [vmem:[%s873 + $0x4a] sm:$0xff]
      %v1083 = vld [vmem:[%s873 + $0x52] sm:$0xff]
      %v1084 = vld [vmem:[%s873 + $0x62] sm:$0xff]
      %v1085 = vld [vmem:[%s873 + $0x6a] sm:$0xff]
      %v1086 = vld [vmem:[%s873 + $0x7a] sm:$0xff]
      %v1087 = vld [vmem:[%s873 + $0x82] sm:$0xff]
      %v1088 = vld [vmem:[%s873 + $0x92] sm:$0xff]
      %v1089 = vld [vmem:[%s873 + $0x9a] sm:$0xff]
      %v1090 = vld [vmem:[%s873 + $0xaa] sm:$0xff]
      %v1091 = vld [vmem:[%s873 + $0xb2] sm:$0xff]
      %v1092 = vld [vmem:[%s873 + $0xc2] sm:$0xff]
      %v1093 = vld [vmem:[%s873 + $0xca] sm:$0xff]
      %v1094 = vld [vmem:[%s873 + $0xda] sm:$0xff]
      %v1095 = vld [vmem:[%s873 + $0xe2] sm:$0xff]
      %v1096 = vld [vmem:[%s873 + $0xf2] sm:$0xff]
      %v1097 = vld [vmem:[%s873 + $0xfa] sm:$0xff]
      %v1098 = vld [vmem:[%s873 + $0x10a] sm:$0xff]
      %v1099 = vld [vmem:[%s873 + $0x112] sm:$0xff]
      %v1100 = vld [vmem:[%s873 + $0x122] sm:$0xff]
      %v1101 = vld [vmem:[%s873 + $0x12a] sm:$0xff]
      %v1102 = vld [vmem:[%s873 + $0x13a] sm:$0xff]
      %v1103 = vld [vmem:[%s873 + $0x142] sm:$0xff]
      %v1104 = vld [vmem:[%s873 + $0x152] sm:$0xff]
      %v1105 = vld [vmem:[%s873 + $0x15a] sm:$0xff]
      %v1106 = vld [vmem:[%s873 + $0x16a] sm:$0xff]
      %v1107 = vld [vmem:[%s873 + $0x172] sm:$0xff]
      %v1108 = vld [vmem:[%s183 + $0x8] sm:$0x1]
      %v1109 = vlaneseq
      %v1110 = vshrl.u32 %v1109, 7
      %v1111 = vsub.s32 0, %v1110
      %v1112 = vrot.slane %v1108, %v1111
      %v1113 = vmul.f32 %v1076, %v1112
      %v1114 = vmul.f32 %v1077, %v1112
      %v1115 = vmul.f32 %v1078, %v1112
      %v1116 = vmul.f32 %v1079, %v1112
      %v1117 = vmul.f32 %v1080, %v1112
      %v1118 = vmul.f32 %v1081, %v1112
      %v1119 = vmul.f32 %v1082, %v1112
      %v1120 = vmul.f32 %v1083, %v1112
      %v1121 = vmul.f32 %v1084, %v1112
      %v1122 = vmul.f32 %v1085, %v1112
      %v1123 = vmul.f32 %v1086, %v1112
      %v1124 = vmul.f32 %v1087, %v1112
      %v1125 = vmul.f32 %v1088, %v1112
      %v1126 = vmul.f32 %v1089, %v1112
      %v1127 = vmul.f32 %v1090, %v1112
      %v1128 = vmul.f32 %v1091, %v1112
      %v1129 = vmul.f32 %v1092, %v1112
      %v1130 = vmul.f32 %v1093, %v1112
      %v1131 = vmul.f32 %v1094, %v1112
      %v1132 = vmul.f32 %v1095, %v1112
      %v1133 = vmul.f32 %v1096, %v1112
      %v1134 = vmul.f32 %v1097, %v1112
      %v1135 = vmul.f32 %v1098, %v1112
      %v1136 = vmul.f32 %v1099, %v1112
      %v1137 = vmul.f32 %v1100, %v1112
      %v1138 = vmul.f32 %v1101, %v1112
      %v1139 = vmul.f32 %v1102, %v1112
      %v1140 = vmul.f32 %v1103, %v1112
      %v1141 = vmul.f32 %v1104, %v1112
      %v1142 = vmul.f32 %v1105, %v1112
      %v1143 = vmul.f32 %v1106, %v1112
      %v1144 = vmul.f32 %v1107, %v1112
      %v1145 = vadd.f32 %v1044, %v1113
      %v1146 = vadd.f32 %v1045, %v1114
      %v1147 = vadd.f32 %v1046, %v1115
      %v1148 = vadd.f32 %v1047, %v1116
      %v1149 = vadd.f32 %v1048, %v1117
      %v1150 = vadd.f32 %v1049, %v1118
      %v1151 = vadd.f32 %v1050, %v1119
      %v1152 = vadd.f32 %v1051, %v1120
      %v1153 = vadd.f32 %v1052, %v1121
      %v1154 = vadd.f32 %v1053, %v1122
      %v1155 = vadd.f32 %v1054, %v1123
      %v1156 = vadd.f32 %v1055, %v1124
      %v1157 = vadd.f32 %v1056, %v1125
      %v1158 = vadd.f32 %v1057, %v1126
      %v1159 = vadd.f32 %v1058, %v1127
      %v1160 = vadd.f32 %v1059, %v1128
      %v1161 = vadd.f32 %v1060, %v1129
      %v1162 = vadd.f32 %v1061, %v1130
      %v1163 = vadd.f32 %v1062, %v1131
      %v1164 = vadd.f32 %v1063, %v1132
      %v1165 = vadd.f32 %v1064, %v1133
      %v1166 = vadd.f32 %v1065, %v1134
      %v1167 = vadd.f32 %v1066, %v1135
      %v1168 = vadd.f32 %v1067, %v1136
      %v1169 = vadd.f32 %v1068, %v1137
      %v1170 = vadd.f32 %v1069, %v1138
      %v1171 = vadd.f32 %v1070, %v1139
      %v1172 = vadd.f32 %v1071, %v1140
      %v1173 = vadd.f32 %v1072, %v1141
      %v1174 = vadd.f32 %v1073, %v1142
      %v1175 = vadd.f32 %v1074, %v1143
      %v1176 = vadd.f32 %v1075, %v1144
      %v1177 = vld [vmem:[%s183 + $0x9] sm:$0x1]
      %v1178 = vlaneseq
      %v1179 = vshrl.u32 %v1178, 7
      %v1180 = vsub.s32 0, %v1179
      %v1181 = vrot.slane %v1177, %v1180
      %v1182 = vadd.f32 %v1145, %v1181
      %v1183 = vadd.f32 %v1146, %v1181
      %v1184 = vadd.f32 %v1147, %v1181
      %v1185 = vadd.f32 %v1148, %v1181
      %v1186 = vadd.f32 %v1149, %v1181
      %v1187 = vadd.f32 %v1150, %v1181
      %v1188 = vadd.f32 %v1151, %v1181
      %v1189 = vadd.f32 %v1152, %v1181
      %v1190 = vadd.f32 %v1153, %v1181
      %v1191 = vadd.f32 %v1154, %v1181
      %v1192 = vadd.f32 %v1155, %v1181
      %v1193 = vadd.f32 %v1156, %v1181
      %v1194 = vadd.f32 %v1157, %v1181
      %v1195 = vadd.f32 %v1158, %v1181
      %v1196 = vadd.f32 %v1159, %v1181
      %v1197 = vadd.f32 %v1160, %v1181
      %v1198 = vadd.f32 %v1161, %v1181
      %v1199 = vadd.f32 %v1162, %v1181
      %v1200 = vadd.f32 %v1163, %v1181
      %v1201 = vadd.f32 %v1164, %v1181
      %v1202 = vadd.f32 %v1165, %v1181
      %v1203 = vadd.f32 %v1166, %v1181
      %v1204 = vadd.f32 %v1167, %v1181
      %v1205 = vadd.f32 %v1168, %v1181
      %v1206 = vadd.f32 %v1169, %v1181
      %v1207 = vadd.f32 %v1170, %v1181
      %v1208 = vadd.f32 %v1171, %v1181
      %v1209 = vadd.f32 %v1172, %v1181
      %v1210 = vadd.f32 %v1173, %v1181
      %v1211 = vadd.f32 %v1174, %v1181
      %v1212 = vadd.f32 %v1175, %v1181
      %v1213 = vadd.f32 %v1176, %v1181
      %v1214 = vmul.f32 %v1182, %v1182
      %v1215 = vmul.f32 %v1183, %v1183
      %v1216 = vmul.f32 %v1184, %v1184
      %v1217 = vmul.f32 %v1185, %v1185
      %v1218 = vmul.f32 %v1186, %v1186
      %v1219 = vmul.f32 %v1187, %v1187
      %v1220 = vmul.f32 %v1188, %v1188
      %v1221 = vmul.f32 %v1189, %v1189
      %v1222 = vmul.f32 %v1190, %v1190
      %v1223 = vmul.f32 %v1191, %v1191
      %v1224 = vmul.f32 %v1192, %v1192
      %v1225 = vmul.f32 %v1193, %v1193
      %v1226 = vmul.f32 %v1194, %v1194
      %v1227 = vmul.f32 %v1195, %v1195
      %v1228 = vmul.f32 %v1196, %v1196
      %v1229 = vmul.f32 %v1197, %v1197
      %v1230 = vmul.f32 %v1198, %v1198
      %v1231 = vmul.f32 %v1199, %v1199
      %v1232 = vmul.f32 %v1200, %v1200
      %v1233 = vmul.f32 %v1201, %v1201
      %v1234 = vmul.f32 %v1202, %v1202
      %v1235 = vmul.f32 %v1203, %v1203
      %v1236 = vmul.f32 %v1204, %v1204
      %v1237 = vmul.f32 %v1205, %v1205
      %v1238 = vmul.f32 %v1206, %v1206
      %v1239 = vmul.f32 %v1207, %v1207
      %v1240 = vmul.f32 %v1208, %v1208
      %v1241 = vmul.f32 %v1209, %v1209
      %v1242 = vmul.f32 %v1210, %v1210
      %v1243 = vmul.f32 %v1211, %v1211
      %v1244 = vmul.f32 %v1212, %v1212
      %v1245 = vmul.f32 %v1213, %v1213
      %v1246 = vmul.f32 %v1182, %v1214
      %v1247 = vmul.f32 %v1183, %v1215
      %v1248 = vmul.f32 %v1184, %v1216
      %v1249 = vmul.f32 %v1185, %v1217
      %v1250 = vmul.f32 %v1186, %v1218
      %v1251 = vmul.f32 %v1187, %v1219
      %v1252 = vmul.f32 %v1188, %v1220
      %v1253 = vmul.f32 %v1189, %v1221
      %v1254 = vmul.f32 %v1190, %v1222
      %v1255 = vmul.f32 %v1191, %v1223
      %v1256 = vmul.f32 %v1192, %v1224
      %v1257 = vmul.f32 %v1193, %v1225
      %v1258 = vmul.f32 %v1194, %v1226
      %v1259 = vmul.f32 %v1195, %v1227
      %v1260 = vmul.f32 %v1196, %v1228
      %v1261 = vmul.f32 %v1197, %v1229
      %v1262 = vmul.f32 %v1198, %v1230
      %v1263 = vmul.f32 %v1199, %v1231
      %v1264 = vmul.f32 %v1200, %v1232
      %v1265 = vmul.f32 %v1201, %v1233
      %v1266 = vmul.f32 %v1202, %v1234
      %v1267 = vmul.f32 %v1203, %v1235
      %v1268 = vmul.f32 %v1204, %v1236
      %v1269 = vmul.f32 %v1205, %v1237
      %v1270 = vmul.f32 %v1206, %v1238
      %v1271 = vmul.f32 %v1207, %v1239
      %v1272 = vmul.f32 %v1208, %v1240
      %v1273 = vmul.f32 %v1209, %v1241
      %v1274 = vmul.f32 %v1210, %v1242
      %v1275 = vmul.f32 %v1211, %v1243
      %v1276 = vmul.f32 %v1212, %v1244
      %v1277 = vmul.f32 %v1213, %v1245
      %v1278 = vmul.f32 %v1246, 0.044715
      %v1279 = vmul.f32 %v1247, 0.044715
      %v1280 = vmul.f32 %v1248, 0.044715
      %v1281 = vmul.f32 %v1249, 0.044715
      %v1282 = vmul.f32 %v1250, 0.044715
      %v1283 = vmul.f32 %v1251, 0.044715
      %v1284 = vmul.f32 %v1252, 0.044715
      %v1285 = vmul.f32 %v1253, 0.044715
      %v1286 = vmul.f32 %v1254, 0.044715
      %v1287 = vmul.f32 %v1255, 0.044715
      %v1288 = vmul.f32 %v1256, 0.044715
      %v1289 = vmul.f32 %v1257, 0.044715
      %v1290 = vmul.f32 %v1258, 0.044715
      %v1291 = vmul.f32 %v1259, 0.044715
      %v1292 = vmul.f32 %v1260, 0.044715
      %v1293 = vmul.f32 %v1261, 0.044715
      %v1294 = vmul.f32 %v1262, 0.044715
      %v1295 = vmul.f32 %v1263, 0.044715
      %v1296 = vmul.f32 %v1264, 0.044715
      %v1297 = vmul.f32 %v1265, 0.044715
      %v1298 = vmul.f32 %v1266, 0.044715
      %v1299 = vmul.f32 %v1267, 0.044715
      %v1300 = vmul.f32 %v1268, 0.044715
      %v1301 = vmul.f32 %v1269, 0.044715
      %v1302 = vmul.f32 %v1270, 0.044715
      %v1303 = vmul.f32 %v1271, 0.044715
      %v1304 = vmul.f32 %v1272, 0.044715
      %v1305 = vmul.f32 %v1273, 0.044715
      %v1306 = vmul.f32 %v1274, 0.044715
      %v1307 = vmul.f32 %v1275, 0.044715
      %v1308 = vmul.f32 %v1276, 0.044715
      %v1309 = vmul.f32 %v1277, 0.044715
      %v1310 = vadd.f32 %v1182, %v1278
      %v1311 = vadd.f32 %v1183, %v1279
      %v1312 = vadd.f32 %v1184, %v1280
      %v1313 = vadd.f32 %v1185, %v1281
      %v1314 = vadd.f32 %v1186, %v1282
      %v1315 = vadd.f32 %v1187, %v1283
      %v1316 = vadd.f32 %v1188, %v1284
      %v1317 = vadd.f32 %v1189, %v1285
      %v1318 = vadd.f32 %v1190, %v1286
      %v1319 = vadd.f32 %v1191, %v1287
      %v1320 = vadd.f32 %v1192, %v1288
      %v1321 = vadd.f32 %v1193, %v1289
      %v1322 = vadd.f32 %v1194, %v1290
      %v1323 = vadd.f32 %v1195, %v1291
      %v1324 = vadd.f32 %v1196, %v1292
      %v1325 = vadd.f32 %v1197, %v1293
      %v1326 = vadd.f32 %v1198, %v1294
      %v1327 = vadd.f32 %v1199, %v1295
      %v1328 = vadd.f32 %v1200, %v1296
      %v1329 = vadd.f32 %v1201, %v1297
      %v1330 = vadd.f32 %v1202, %v1298
      %v1331 = vadd.f32 %v1203, %v1299
      %v1332 = vadd.f32 %v1204, %v1300
      %v1333 = vadd.f32 %v1205, %v1301
      %v1334 = vadd.f32 %v1206, %v1302
      %v1335 = vadd.f32 %v1207, %v1303
      %v1336 = vadd.f32 %v1208, %v1304
      %v1337 = vadd.f32 %v1209, %v1305
      %v1338 = vadd.f32 %v1210, %v1306
      %v1339 = vadd.f32 %v1211, %v1307
      %v1340 = vadd.f32 %v1212, %v1308
      %v1341 = vadd.f32 %v1213, %v1309
      %v1342 = vmul.f32 %v1310, 0.7978846
      %v1343 = vmul.f32 %v1311, 0.7978846
      %v1344 = vmul.f32 %v1312, 0.7978846
      %v1345 = vmul.f32 %v1313, 0.7978846
      %v1346 = vmul.f32 %v1314, 0.7978846
      %v1347 = vmul.f32 %v1315, 0.7978846
      %v1348 = vmul.f32 %v1316, 0.7978846
      %v1349 = vmul.f32 %v1317, 0.7978846
      %v1350 = vmul.f32 %v1318, 0.7978846
      %v1351 = vmul.f32 %v1319, 0.7978846
      %v1352 = vmul.f32 %v1320, 0.7978846
      %v1353 = vmul.f32 %v1321, 0.7978846
      %v1354 = vmul.f32 %v1322, 0.7978846
      %v1355 = vmul.f32 %v1323, 0.7978846
      %v1356 = vmul.f32 %v1324, 0.7978846
      %v1357 = vmul.f32 %v1325, 0.7978846
      %v1358 = vmul.f32 %v1326, 0.7978846
      %v1359 = vmul.f32 %v1327, 0.7978846
      %v1360 = vmul.f32 %v1328, 0.7978846
      %v1361 = vmul.f32 %v1329, 0.7978846
      %v1362 = vmul.f32 %v1330, 0.7978846
      %v1363 = vmul.f32 %v1331, 0.7978846
      %v1364 = vmul.f32 %v1332, 0.7978846
      %v1365 = vmul.f32 %v1333, 0.7978846
      %v1366 = vmul.f32 %v1334, 0.7978846
      %v1367 = vmul.f32 %v1335, 0.7978846
      %v1368 = vmul.f32 %v1336, 0.7978846
      %v1369 = vmul.f32 %v1337, 0.7978846
      %v1370 = vmul.f32 %v1338, 0.7978846
      %v1371 = vmul.f32 %v1339, 0.7978846
      %v1372 = vmul.f32 %v1340, 0.7978846
      %v1373 = vmul.f32 %v1341, 0.7978846
      %v1374 = vtanh.pop %v1342
      %v1375 = vtanh.pop %v1343
      %v1376 = vtanh.pop %v1344
      %v1377 = vtanh.pop %v1345
      %v1378 = vtanh.pop %v1346
      %v1379 = vtanh.pop %v1347
      %v1380 = vtanh.pop %v1348
      %v1381 = vtanh.pop %v1349
      %v1382 = vtanh.pop %v1350
      %v1383 = vtanh.pop %v1351
      %v1384 = vtanh.pop %v1352
      %v1385 = vtanh.pop %v1353
      %v1386 = vtanh.pop %v1354
      %v1387 = vtanh.pop %v1355
      %v1388 = vtanh.pop %v1356
      %v1389 = vtanh.pop %v1357
      %v1390 = vtanh.pop %v1358
      %v1391 = vtanh.pop %v1359
      %v1392 = vtanh.pop %v1360
      %v1393 = vtanh.pop %v1361
      %v1394 = vtanh.pop %v1362
      %v1395 = vtanh.pop %v1363
      %v1396 = vtanh.pop %v1364
      %v1397 = vtanh.pop %v1365
      %v1398 = vtanh.pop %v1366
      %v1399 = vtanh.pop %v1367
      %v1400 = vtanh.pop %v1368
      %v1401 = vtanh.pop %v1369
      %v1402 = vtanh.pop %v1370
      %v1403 = vtanh.pop %v1371
      %v1404 = vtanh.pop %v1372
      %v1405 = vtanh.pop %v1373
      %v1406 = vadd.f32 %v1374, 1.0
      %v1407 = vadd.f32 %v1375, 1.0
      %v1408 = vadd.f32 %v1376, 1.0
      %v1409 = vadd.f32 %v1377, 1.0
      %v1410 = vadd.f32 %v1378, 1.0
      %v1411 = vadd.f32 %v1379, 1.0
      %v1412 = vadd.f32 %v1380, 1.0
      %v1413 = vadd.f32 %v1381, 1.0
      %v1414 = vadd.f32 %v1382, 1.0
      %v1415 = vadd.f32 %v1383, 1.0
      %v1416 = vadd.f32 %v1384, 1.0
      %v1417 = vadd.f32 %v1385, 1.0
      %v1418 = vadd.f32 %v1386, 1.0
      %v1419 = vadd.f32 %v1387, 1.0
      %v1420 = vadd.f32 %v1388, 1.0
      %v1421 = vadd.f32 %v1389, 1.0
      %v1422 = vadd.f32 %v1390, 1.0
      %v1423 = vadd.f32 %v1391, 1.0
      %v1424 = vadd.f32 %v1392, 1.0
      %v1425 = vadd.f32 %v1393, 1.0
      %v1426 = vadd.f32 %v1394, 1.0
      %v1427 = vadd.f32 %v1395, 1.0
      %v1428 = vadd.f32 %v1396, 1.0
      %v1429 = vadd.f32 %v1397, 1.0
      %v1430 = vadd.f32 %v1398, 1.0
      %v1431 = vadd.f32 %v1399, 1.0
      %v1432 = vadd.f32 %v1400, 1.0
      %v1433 = vadd.f32 %v1401, 1.0
      %v1434 = vadd.f32 %v1402, 1.0
      %v1435 = vadd.f32 %v1403, 1.0
      %v1436 = vadd.f32 %v1404, 1.0
      %v1437 = vadd.f32 %v1405, 1.0
      %v1438 = vmul.f32 %v1406, 0.5
      %v1439 = vmul.f32 %v1407, 0.5
      %v1440 = vmul.f32 %v1408, 0.5
      %v1441 = vmul.f32 %v1409, 0.5
      %v1442 = vmul.f32 %v1410, 0.5
      %v1443 = vmul.f32 %v1411, 0.5
      %v1444 = vmul.f32 %v1412, 0.5
      %v1445 = vmul.f32 %v1413, 0.5
      %v1446 = vmul.f32 %v1414, 0.5
      %v1447 = vmul.f32 %v1415, 0.5
      %v1448 = vmul.f32 %v1416, 0.5
      %v1449 = vmul.f32 %v1417, 0.5
      %v1450 = vmul.f32 %v1418, 0.5
      %v1451 = vmul.f32 %v1419, 0.5
      %v1452 = vmul.f32 %v1420, 0.5
      %v1453 = vmul.f32 %v1421, 0.5
      %v1454 = vmul.f32 %v1422, 0.5
      %v1455 = vmul.f32 %v1423, 0.5
      %v1456 = vmul.f32 %v1424, 0.5
      %v1457 = vmul.f32 %v1425, 0.5
      %v1458 = vmul.f32 %v1426, 0.5
      %v1459 = vmul.f32 %v1427, 0.5
      %v1460 = vmul.f32 %v1428, 0.5
      %v1461 = vmul.f32 %v1429, 0.5
      %v1462 = vmul.f32 %v1430, 0.5
      %v1463 = vmul.f32 %v1431, 0.5
      %v1464 = vmul.f32 %v1432, 0.5
      %v1465 = vmul.f32 %v1433, 0.5
      %v1466 = vmul.f32 %v1434, 0.5
      %v1467 = vmul.f32 %v1435, 0.5
      %v1468 = vmul.f32 %v1436, 0.5
      %v1469 = vmul.f32 %v1437, 0.5
      %v1470 = vmul.f32 %v1182, %v1438
      %v1471 = vmul.f32 %v1183, %v1439
      %v1472 = vmul.f32 %v1184, %v1440
      %v1473 = vmul.f32 %v1185, %v1441
      %v1474 = vmul.f32 %v1186, %v1442
      %v1475 = vmul.f32 %v1187, %v1443
      %v1476 = vmul.f32 %v1188, %v1444
      %v1477 = vmul.f32 %v1189, %v1445
      %v1478 = vmul.f32 %v1190, %v1446
      %v1479 = vmul.f32 %v1191, %v1447
      %v1480 = vmul.f32 %v1192, %v1448
      %v1481 = vmul.f32 %v1193, %v1449
      %v1482 = vmul.f32 %v1194, %v1450
      %v1483 = vmul.f32 %v1195, %v1451
      %v1484 = vmul.f32 %v1196, %v1452
      %v1485 = vmul.f32 %v1197, %v1453
      %v1486 = vmul.f32 %v1198, %v1454
      %v1487 = vmul.f32 %v1199, %v1455
      %v1488 = vmul.f32 %v1200, %v1456
      %v1489 = vmul.f32 %v1201, %v1457
      %v1490 = vmul.f32 %v1202, %v1458
      %v1491 = vmul.f32 %v1203, %v1459
      %v1492 = vmul.f32 %v1204, %v1460
      %v1493 = vmul.f32 %v1205, %v1461
      %v1494 = vmul.f32 %v1206, %v1462
      %v1495 = vmul.f32 %v1207, %v1463
      %v1496 = vmul.f32 %v1208, %v1464
      %v1497 = vmul.f32 %v1209, %v1465
      %v1498 = vmul.f32 %v1210, %v1466
      %v1499 = vmul.f32 %v1211, %v1467
      %v1500 = vmul.f32 %v1212, %v1468
      %v1501 = vmul.f32 %v1213, %v1469
      %v1502 = vld [vmem:[%s183 + $0xa] sm:$0x1]
      %v1503 = vlaneseq
      %v1504 = vshrl.u32 %v1503, 7
      %v1505 = vsub.s32 0, %v1504
      %v1506 = vrot.slane %v1502, %v1505
      %v1507 = vmul.f32 %v1470, %v1506
      %v1508 = vmul.f32 %v1471, %v1506
      %v1509 = vmul.f32 %v1472, %v1506
      %v1510 = vmul.f32 %v1473, %v1506
      %v1511 = vmul.f32 %v1474, %v1506
      %v1512 = vmul.f32 %v1475, %v1506
      %v1513 = vmul.f32 %v1476, %v1506
      %v1514 = vmul.f32 %v1477, %v1506
      %v1515 = vmul.f32 %v1478, %v1506
      %v1516 = vmul.f32 %v1479, %v1506
      %v1517 = vmul.f32 %v1480, %v1506
      %v1518 = vmul.f32 %v1481, %v1506
      %v1519 = vmul.f32 %v1482, %v1506
      %v1520 = vmul.f32 %v1483, %v1506
      %v1521 = vmul.f32 %v1484, %v1506
      %v1522 = vmul.f32 %v1485, %v1506
      %v1523 = vmul.f32 %v1486, %v1506
      %v1524 = vmul.f32 %v1487, %v1506
      %v1525 = vmul.f32 %v1488, %v1506
      %v1526 = vmul.f32 %v1489, %v1506
      %v1527 = vmul.f32 %v1490, %v1506
      %v1528 = vmul.f32 %v1491, %v1506
      %v1529 = vmul.f32 %v1492, %v1506
      %v1530 = vmul.f32 %v1493, %v1506
      %v1531 = vmul.f32 %v1494, %v1506
      %v1532 = vmul.f32 %v1495, %v1506
      %v1533 = vmul.f32 %v1496, %v1506
      %v1534 = vmul.f32 %v1497, %v1506
      %v1535 = vmul.f32 %v1498, %v1506
      %v1536 = vmul.f32 %v1499, %v1506
      %v1537 = vmul.f32 %v1500, %v1506
      %v1538 = vmul.f32 %v1501, %v1506
      %v1539 = vld [vmem:[%s183 + $0xb] sm:$0x1]
      %v1540 = vlaneseq
      %v1541 = vshrl.u32 %v1540, 7
      %v1542 = vsub.s32 0, %v1541
      %v1543 = vrot.slane %v1539, %v1542
      %v1544 = vadd.f32 %v1507, %v1543
      %v1545 = vadd.f32 %v1508, %v1543
      %v1546 = vadd.f32 %v1509, %v1543
      %v1547 = vadd.f32 %v1510, %v1543
      %v1548 = vadd.f32 %v1511, %v1543
      %v1549 = vadd.f32 %v1512, %v1543
      %v1550 = vadd.f32 %v1513, %v1543
      %v1551 = vadd.f32 %v1514, %v1543
      %v1552 = vadd.f32 %v1515, %v1543
      %v1553 = vadd.f32 %v1516, %v1543
      %v1554 = vadd.f32 %v1517, %v1543
      %v1555 = vadd.f32 %v1518, %v1543
      %v1556 = vadd.f32 %v1519, %v1543
      %v1557 = vadd.f32 %v1520, %v1543
      %v1558 = vadd.f32 %v1521, %v1543
      %v1559 = vadd.f32 %v1522, %v1543
      %v1560 = vadd.f32 %v1523, %v1543
      %v1561 = vadd.f32 %v1524, %v1543
      %v1562 = vadd.f32 %v1525, %v1543
      %v1563 = vadd.f32 %v1526, %v1543
      %v1564 = vadd.f32 %v1527, %v1543
      %v1565 = vadd.f32 %v1528, %v1543
      %v1566 = vadd.f32 %v1529, %v1543
      %v1567 = vadd.f32 %v1530, %v1543
      %v1568 = vadd.f32 %v1531, %v1543
      %v1569 = vadd.f32 %v1532, %v1543
      %v1570 = vadd.f32 %v1533, %v1543
      %v1571 = vadd.f32 %v1534, %v1543
      %v1572 = vadd.f32 %v1535, %v1543
      %v1573 = vadd.f32 %v1536, %v1543
      %v1574 = vadd.f32 %v1537, %v1543
      %v1575 = vadd.f32 %v1538, %v1543
      %v1576 = vadd.f32 %v1544, %v192
      %v1577 = vadd.f32 %v1545, %v193
      %v1578 = vadd.f32 %v1546, %v194
      %v1579 = vadd.f32 %v1547, %v195
      %v1580 = vadd.f32 %v1548, %v196
      %v1581 = vadd.f32 %v1549, %v197
      %v1582 = vadd.f32 %v1550, %v198
      %v1583 = vadd.f32 %v1551, %v199
      %v1584 = vadd.f32 %v1552, %v200
      %v1585 = vadd.f32 %v1553, %v201
      %v1586 = vadd.f32 %v1554, %v202
      %v1587 = vadd.f32 %v1555, %v203
      %v1588 = vadd.f32 %v1556, %v204
      %v1589 = vadd.f32 %v1557, %v205
      %v1590 = vadd.f32 %v1558, %v206
      %v1591 = vadd.f32 %v1559, %v207
      %v1592 = vadd.f32 %v1560, %v208
      %v1593 = vadd.f32 %v1561, %v209
      %v1594 = vadd.f32 %v1562, %v210
      %v1595 = vadd.f32 %v1563, %v211
      %v1596 = vadd.f32 %v1564, %v212
      %v1597 = vadd.f32 %v1565, %v213
      %v1598 = vadd.f32 %v1566, %v214
      %v1599 = vadd.f32 %v1567, %v215
      %v1600 = vadd.f32 %v1568, %v216
      %v1601 = vadd.f32 %v1569, %v217
      %v1602 = vadd.f32 %v1570, %v218
      %v1603 = vadd.f32 %v1571, %v219
      %v1604 = vadd.f32 %v1572, %v220
      %v1605 = vadd.f32 %v1573, %v221
      %v1606 = vadd.f32 %v1574, %v222
      %v1607 = vadd.f32 %v1575, %v223
      %1608 = vst.msk [vmem:[%s191] sm:$0xff] %vm224, %v1576
      %1609 = vst.msk [vmem:[%s191 + $0x8] sm:$0xff] %vm224, %v1577
      %1610 = vst.msk [vmem:[%s191 + $0x10] sm:$0xff] %vm224, %v1578
      %1611 = vst.msk [vmem:[%s191 + $0x18] sm:$0xff] %vm224, %v1579
      %1612 = vst.msk [vmem:[%s191 + $0x20] sm:$0xff] %vm224, %v1580
      %1613 = vst.msk [vmem:[%s191 + $0x28] sm:$0xff] %vm224, %v1581
      %1614 = vst.msk [vmem:[%s191 + $0x30] sm:$0xff] %vm224, %v1582
      %1615 = vst.msk [vmem:[%s191 + $0x38] sm:$0xff] %vm224, %v1583
      %1616 = vst.msk [vmem:[%s191 + $0x40] sm:$0xff] %vm224, %v1584
      %1617 = vst.msk [vmem:[%s191 + $0x48] sm:$0xff] %vm224, %v1585
      %1618 = vst.msk [vmem:[%s191 + $0x50] sm:$0xff] %vm224, %v1586
      %1619 = vst.msk [vmem:[%s191 + $0x58] sm:$0xff] %vm224, %v1587
      %1620 = vst.msk [vmem:[%s191 + $0x60] sm:$0xff] %vm224, %v1588
      %1621 = vst.msk [vmem:[%s191 + $0x68] sm:$0xff] %vm224, %v1589
      %1622 = vst.msk [vmem:[%s191 + $0x70] sm:$0xff] %vm224, %v1590
      %1623 = vst.msk [vmem:[%s191 + $0x78] sm:$0xff] %vm224, %v1591
      %1624 = vst.msk [vmem:[%s191 + $0x80] sm:$0xff] %vm224, %v1592
      %1625 = vst.msk [vmem:[%s191 + $0x88] sm:$0xff] %vm224, %v1593
      %1626 = vst.msk [vmem:[%s191 + $0x90] sm:$0xff] %vm224, %v1594
      %1627 = vst.msk [vmem:[%s191 + $0x98] sm:$0xff] %vm224, %v1595
      %1628 = vst.msk [vmem:[%s191 + $0xa0] sm:$0xff] %vm224, %v1596
      %1629 = vst.msk [vmem:[%s191 + $0xa8] sm:$0xff] %vm224, %v1597
      %1630 = vst.msk [vmem:[%s191 + $0xb0] sm:$0xff] %vm224, %v1598
      %1631 = vst.msk [vmem:[%s191 + $0xb8] sm:$0xff] %vm224, %v1599
      %1632 = vst.msk [vmem:[%s191 + $0xc0] sm:$0xff] %vm224, %v1600
      %1633 = vst.msk [vmem:[%s191 + $0xc8] sm:$0xff] %vm224, %v1601
      %1634 = vst.msk [vmem:[%s191 + $0xd0] sm:$0xff] %vm224, %v1602
      %1635 = vst.msk [vmem:[%s191 + $0xd8] sm:$0xff] %vm224, %v1603
      %1636 = vst.msk [vmem:[%s191 + $0xe0] sm:$0xff] %vm224, %v1604
      %1637 = vst.msk [vmem:[%s191 + $0xe8] sm:$0xff] %vm224, %v1605
      %1638 = vst.msk [vmem:[%s191 + $0xf0] sm:$0xff] %vm224, %v1606
      %1639 = vst.msk [vmem:[%s191 + $0xf8] sm:$0xff] %vm224, %v1607
      %p1640 = scmp.lt.s32.totalorder %s17, 1
      %s1641 = scalar_select %p1640, %s17, 1
      %p1642 = scmp.lt.s32.totalorder %s18, 0
      %s1643 = scalar_select %p1642, %s18, 0
      %s1644 = smul.addr %s1641, 32
      %s1645 = sadd.s32 %s1643, %s1644
      %s1646 = smul.addr %s1645, 8
      %s1647 = scalar_lea.vmem %s2, %s1646
      // Predicated region
      $region29: #{tpu_custom_call.1} parent=27 // pred_check
        %p1648 = pneg %p99
      $region30: #{tpu_custom_call.1} parent=27 // pred_check_branch
        %1650 = sbr.rel (%p1648) target = $region32
      $region31: #{tpu_custom_call.1} parent=27 // pred_region
        _
      $region32: #{tpu_custom_call.1} parent=27 // pred_fallthru
        _
    $region28: #{tpu_custom_call.1} parent=5 // pred_fallthru
      _
    %p1651 = scmp.le.s32.totalorder 2, %s8
    // Predicated region
    $region33: #{tpu_custom_call.1} parent=5 // pred_check
      %p1652 = pneg %p1651
    $region34: #{tpu_custom_call.1} parent=5 // pred_check_branch
      %1654 = sbr.rel (%p1652) target = $region36
    $region35: #{tpu_custom_call.1} parent=5 // pred_region
      %s1655 = ssub.s32 %s8, 2
      // Predicated region
      $region37: #{tpu_custom_call.1} parent=35 // pred_check
        %p1656 = pneg %p105
      $region38: #{tpu_custom_call.1} parent=35 // pred_check_branch
        %1658 = sbr.rel (%p1656) target = $region40
      $region39: #{tpu_custom_call.1} parent=35 // pred_region
        %p1659 = scmp.lt.s32.totalorder %s19, 1
        %s1660 = scalar_select %p1659, %s19, 1
        %p1661 = scmp.lt.s32.totalorder %s20, 0
        %s1662 = scalar_select %p1661, %s20, 0
        %s1663 = smul.addr %s1660, 32
        %s1664 = sadd.s32 %s1662, %s1663
        %s1665 = smul.addr %s1664, 8
        %s1666 = scalar_lea.vmem %s2, %s1665
      $region40: #{tpu_custom_call.1} parent=35 // pred_fallthru
        _
    $region36: #{tpu_custom_call.1} parent=5 // pred_fallthru
      _
  $region6: #{tpu_custom_call.1} parent=0 // loop_footer
    %s12 = sadd.s32 1, %s8
  $region7: #{tpu_custom_call.1} parent=0 // loop_footer_branch
    %7 = sbr.rel target = $region3
  $region8: #{tpu_custom_call.1} parent=0 // loop_exit
    _

</llo_original>
